<compile_context>
chip_gen: v7x
topology: tpu7x:2x2x1
jax: 0.10.0
libtpu: 0.0.40
codegen_flags: <defaults>
</compile_context>

<pallas_src>
import functools
import math

import jax
import jax.numpy as jnp
from jax.experimental import pallas as pl
from jax.experimental.pallas import tpu as pltpu


# ---------------------------------------------------------------------------
# helpers
# ---------------------------------------------------------------------------
def _pick_tile(dim, target, align):
    """Largest multiple of `align` that divides `dim` and is <= target; else full dim."""
    if dim <= target:
        return dim
    t = (target // align) * align
    while t >= align:
        if dim % t == 0:
            return t
        t -= align
    return dim


# ---------------------------------------------------------------------------
# Kernel 1 & 3: tiled dense linear  y = x @ w + b   (w stored as (in, out))
# ---------------------------------------------------------------------------
def _linear_kernel(x_ref, w_ref, b_ref, o_ref, acc_ref):
    kk = pl.program_id(2)

    @pl.when(kk == 0)
    def _init():
        acc_ref[...] = jnp.zeros_like(acc_ref)

    acc_ref[...] += jnp.dot(x_ref[...], w_ref[...],
                            preferred_element_type=jnp.float32)

    @pl.when(kk == pl.num_programs(2) - 1)
    def _finalize():
        # bias added exactly once, after the full-K accumulation
        o_ref[...] = (acc_ref[...] + b_ref[...]).astype(o_ref.dtype)


def linear(x, w, b, *, tm=256, tn=256, tk=512):
    # x: (M, K), w: (K, N), b: (1, N)
    M, K = x.shape
    N = w.shape[1]
    tm = _pick_tile(M, tm, 8)      # sublane dim of x / out blocks
    tn = _pick_tile(N, tn, 128)    # lane dim of w / out / bias blocks
    tk = _pick_tile(K, tk, 128)    # lane dim of x block, sublane dim of w block

    cost = pl.CostEstimate(
        flops=2 * M * N * K,
        transcendentals=0,
        bytes_accessed=int((M * K + K * N + M * N + N) * x.dtype.itemsize),
    )
    return pl.pallas_call(
        _linear_kernel,
        out_shape=jax.ShapeDtypeStruct((M, N), x.dtype),
        grid=(M // tm, N // tn, K // tk),
        in_specs=[
            pl.BlockSpec((tm, tk), lambda i, j, kk: (i, kk)),
            pl.BlockSpec((tk, tn), lambda i, j, kk: (kk, j)),
            pl.BlockSpec((1, tn), lambda i, j, kk: (0, j)),
        ],
        out_specs=pl.BlockSpec((tm, tn), lambda i, j, kk: (i, j)),
        scratch_shapes=[pltpu.VMEM((tm, tn), jnp.float32)],
        compiler_params=pltpu.CompilerParams(
            dimension_semantics=("parallel", "parallel", "arbitrary")),
        cost_estimate=cost,
    )(x, w, b)


# ---------------------------------------------------------------------------
# Kernel 2: flash-style causal attention.
# q, k, v, out are all (B, T, C); heads handled inside the kernel so the head
# split / transpose / merge never touch HBM.
# ---------------------------------------------------------------------------
def _flash_attn_kernel(q_ref, k_ref, v_ref, o_ref, m_sc, l_sc, acc_sc, *,
                       n_head, scale):
    qi = pl.program_id(1)
    ki = pl.program_id(2)
    blk_q = q_ref.shape[1]
    blk_k = k_ref.shape[1]
    C = q_ref.shape[2]
    d = C // n_head

    @pl.when(ki == 0)
    def _init():
        m_sc[...] = jnp.full_like(m_sc, -jnp.inf)
        l_sc[...] = jnp.zeros_like(l_sc)
        acc_sc[...] = jnp.zeros_like(acc_sc)

    # Causal tile skip: only KV tiles that intersect the lower triangle compute.
    @pl.when(ki * blk_k <= qi * blk_q + (blk_q - 1))
    def _compute():
        q = q_ref[0] * scale          # fold 1/sqrt(d) into the (blk_q, C) Q tile
        k = k_ref[0]                  # (blk_k, C)
        v = v_ref[0]                  # (blk_k, C)

        # per-tile causal mask (blk_q x blk_k), never the full (T, T)
        row = qi * blk_q + jax.lax.broadcasted_iota(jnp.int32, (blk_q, blk_k), 0)
        col = ki * blk_k + jax.lax.broadcasted_iota(jnp.int32, (blk_q, blk_k), 1)
        causal = row >= col

        for h in range(n_head):
            sl = slice(h * d, (h + 1) * d)
            # QK^T without materializing k.T: contract the D axes directly
            s = jax.lax.dot_general(
                q[:, sl], k[:, sl], (((1,), (1,)), ((), ())),
                preferred_element_type=jnp.float32)              # (blk_q, blk_k)
            s = jnp.where(causal, s, -jnp.inf)

            m_prev = m_sc[h]                                     # (blk_q, 1)
            m_new = jnp.maximum(m_prev, jnp.max(s, axis=-1, keepdims=True))
            alpha = jnp.exp(m_prev - m_new)
            p = jnp.exp(s - m_new)
            l_sc[h] = alpha * l_sc[h] + jnp.sum(p, axis=-1, keepdims=True)
            acc_sc[h] = alpha * acc_sc[h] + jax.lax.dot_general(
                p.astype(v.dtype), v[:, sl], (((1,), (0,)), ((), ())),
                preferred_element_type=jnp.float32)
            m_sc[h] = m_new

    @pl.when(ki == pl.num_programs(2) - 1)
    def _finalize():
        # normalize each head and emit one lane-dense (blk_q, C) store
        out = jnp.concatenate(
            [acc_sc[h] * pl.reciprocal(l_sc[h], approx=True)
             for h in range(n_head)], axis=-1)
        o_ref[0] = out.astype(o_ref.dtype)


def flash_causal_attention(q, k, v, n_head, *, blk_q=128, blk_k=128):
    B, T, C = q.shape
    d = C // n_head
    scale = 1.0 / math.sqrt(d)
    blk_q = _pick_tile(T, blk_q, 8)
    blk_k = _pick_tile(T, blk_k, 8)

    def q_index(b, qi, ki):
        return (b, qi, 0)

    def kv_index(b, qi, ki):
        # Clamp to the last KV tile that intersects this Q tile so fully-masked
        # (skipped) tiles never trigger a DMA re-fetch.
        if blk_q == blk_k:
            last = qi
        else:
            last = (qi * blk_q + (blk_q - 1)) // blk_k
        return (b, jnp.minimum(ki, last), 0)

    cost = pl.CostEstimate(
        flops=2 * B * T * T * C,                    # qk^T + pv, ~causal-halved
        transcendentals=B * n_head * T * T // 2,
        bytes_accessed=int(4 * B * T * C * q.dtype.itemsize),
    )
    kernel = functools.partial(_flash_attn_kernel, n_head=n_head, scale=scale)
    return pl.pallas_call(
        kernel,
        out_shape=jax.ShapeDtypeStruct((B, T, C), q.dtype),
        grid=(B, T // blk_q, T // blk_k),
        in_specs=[
            pl.BlockSpec((1, blk_q, C), q_index),
            pl.BlockSpec((1, blk_k, C), kv_index),
            pl.BlockSpec((1, blk_k, C), kv_index),
        ],
        out_specs=pl.BlockSpec((1, blk_q, C), q_index),
        scratch_shapes=[
            pltpu.VMEM((n_head, blk_q, 1), jnp.float32),   # running max m
            pltpu.VMEM((n_head, blk_q, 1), jnp.float32),   # running sum l
            pltpu.VMEM((n_head, blk_q, d), jnp.float32),   # output accumulator
        ],
        compiler_params=pltpu.CompilerParams(
            dimension_semantics=("parallel", "parallel", "arbitrary")),
        cost_estimate=cost,
    )(q, k, v)


# ---------------------------------------------------------------------------
# Module wrapper (matches CausalSelfAttention.forward)
# ---------------------------------------------------------------------------
def causal_self_attention(x, params, n_head):
    B, T, C = x.shape
    x2 = x.reshape(B * T, C)

    # c_attn: compute q/k/v directly from column slices of the fused weight so no
    # jnp.split copy or head transpose of the activations is needed.
    w, b = params["w_attn"], params["b_attn"]
    q = linear(x2, w[:, :C], b[:, :C]).reshape(B, T, C)
    k = linear(x2, w[:, C:2 * C], b[:, C:2 * C]).reshape(B, T, C)
    v = linear(x2, w[:, 2 * C:], b[:, 2 * C:]).reshape(B, T, C)

    # flash attention; heads already merged back into (B, T, C)
    y = flash_causal_attention(q, k, v, n_head)

    # c_proj
    y = linear(y.reshape(B * T, C), params["w_proj"], params["b_proj"])
    return y.reshape(B, T, C)


# Pure-JAX reference for the correctness check
def _reference(x, params, n_head):
    B, T, C = x.shape
    D = C // n_head
    qkv = x.reshape(B * T, C) @ params["w_attn"] + params["b_attn"]
    qkv = qkv.reshape(B, T, 3 * C)
    q, k, v = jnp.split(qkv, 3, axis=2)
    q = q.reshape(B, T, n_head, D).transpose(0, 2, 1, 3)
    k = k.reshape(B, T, n_head, D).transpose(0, 2, 1, 3)
    v = v.reshape(B, T, n_head, D).transpose(0, 2, 1, 3)
    s = jnp.einsum("bhqd,bhkd->bhqk", q, k) / math.sqrt(D)
    mask = jnp.tril(jnp.ones((T, T), dtype=bool))
    s = jnp.where(mask, s, -jnp.inf)
    p = jax.nn.softmax(s, axis=-1)
    y = jnp.einsum("bhqk,bhkd->bhqd", p, v)
    y = y.transpose(0, 2, 1, 3).reshape(B * T, C)
    y = y @ params["w_proj"] + params["b_proj"]
    return y.reshape(B, T, C)


if __name__ == "__main__":
    # Small, module-consistent shapes: B=2, T=8 (seq), C=32 (n_embd), 4 heads.
    B, T, C, n_head = 2, 8, 32, 4

    key = jax.random.PRNGKey(0)
    kx, kw1, kb1, kw2, kb2 = jax.random.split(key, 5)

    x = jax.random.normal(kx, (B, T, C), dtype=jnp.float32)

    # Parameters stored pre-transposed as (in, out), matching nn.Linear semantics.
    params = {
        "w_attn": jax.random.normal(kw1, (C, 3 * C), dtype=jnp.float32) * 0.02,
        "b_attn": jax.random.normal(kb1, (1, 3 * C), dtype=jnp.float32) * 0.02,
        "w_proj": jax.random.normal(kw2, (C, C), dtype=jnp.float32) * 0.02,
        "b_proj": jax.random.normal(kb2, (1, C), dtype=jnp.float32) * 0.02,
    }

    fwd = jax.jit(functools.partial(causal_self_attention, n_head=n_head))
    y = jax.block_until_ready(fwd(x, params))

    y_ref = _reference(x, params, n_head)
    assert jnp.allclose(y, y_ref, atol=2e-3, rtol=2e-3), "mismatch vs reference"

    print("KERNEL_OK")
</pallas_src>

<mosaic_0001>
module attributes {stable_mosaic.version = 11 : i64} {
  func.func @_linear_kernel(%arg0: i32, %arg1: i32, %arg2: i32, %arg3: memref<16x32xf32, #tpu.memory_space<vmem>>, %arg4: memref<32x32xf32, #tpu.memory_space<vmem>>, %arg5: memref<1x32xf32, #tpu.memory_space<vmem>>, %arg6: memref<16x32xf32, #tpu.memory_space<vmem>>, %arg7: memref<16x32xf32, #tpu.memory_space<vmem>>) attributes {dimension_semantics = [#tpu.dimension_semantics<parallel>, #tpu.dimension_semantics<parallel>, #tpu.dimension_semantics<arbitrary>], iteration_bounds = array<i64: 1, 1, 1>, scalar_prefetch = 0 : i64, scratch_operands = 1 : i64, tpu.core_type = #tpu.core_type<tc>, window_params = [{transform_indices = @transform_0, window_bounds = array<i64: 16, 32>}, {transform_indices = @transform_1, window_bounds = array<i64: 32, 32>}, {transform_indices = @transform_2, window_bounds = array<i64: 1, 32>}, {transform_indices = @transform_3, window_bounds = array<i64: 16, 32>}]} {
    %c0_i32 = arith.constant 0 : i32
    %0 = arith.cmpi eq, %arg2, %c0_i32 : i32
    %1 = arith.extui %0 : i1 to i32
    %c0_i32_0 = arith.constant 0 : i32
    %2 = arith.cmpi ne, %1, %c0_i32_0 : i32
    scf.if %2 {
      %cst_10 = arith.constant 0.000000e+00 : f32
      %12 = vector.broadcast %cst_10 : f32 to vector<16x32xf32>
      %c0_11 = arith.constant 0 : index
      %c0_12 = arith.constant 0 : index
      %13 = vector.load %arg7[%c0_11, %c0_12] : memref<16x32xf32, #tpu.memory_space<vmem>>, vector<16x32xf32>
      tpu.vector_store %arg7[%c0_11, %c0_12], %12 {strides = array<i32>} : memref<16x32xf32, #tpu.memory_space<vmem>>, vector<16x32xf32>,
    } else {
    }
    %c0 = arith.constant 0 : index
    %c0_1 = arith.constant 0 : index
    %3 = vector.load %arg7[%c0, %c0_1] : memref<16x32xf32, #tpu.memory_space<vmem>>, vector<16x32xf32>
    %c0_2 = arith.constant 0 : index
    %c0_3 = arith.constant 0 : index
    %4 = vector.load %arg3[%c0_2, %c0_3] : memref<16x32xf32, #tpu.memory_space<vmem>>, vector<16x32xf32>
    %c0_4 = arith.constant 0 : index
    %c0_5 = arith.constant 0 : index
    %5 = vector.load %arg4[%c0_4, %c0_5] : memref<32x32xf32, #tpu.memory_space<vmem>>, vector<32x32xf32>
    %cst = arith.constant dense<0.000000e+00> : vector<16x32xf32>
    %6 = tpu.matmul %4, %5, %cst {dimension_numbers = #tpu.dot_dimension_numbers<[1], [0], [0], [1], [0, 0, 1, 1], [], []>} : vector<16x32xf32>, vector<32x32xf32>, vector<16x32xf32> -> vector<16x32xf32>
    %7 = arith.addf %3, %6 : vector<16x32xf32>
    %c0_6 = arith.constant 0 : index
    %c0_7 = arith.constant 0 : index
    %8 = vector.load %arg7[%c0_6, %c0_7] : memref<16x32xf32, #tpu.memory_space<vmem>>, vector<16x32xf32>
    tpu.vector_store %arg7[%c0_6, %c0_7], %7 {strides = array<i32>} : memref<16x32xf32, #tpu.memory_space<vmem>>, vector<16x32xf32>,
    %c0_i32_8 = arith.constant 0 : i32
    %9 = arith.cmpi eq, %arg2, %c0_i32_8 : i32
    %10 = arith.extui %9 : i1 to i32
    %c0_i32_9 = arith.constant 0 : i32
    %11 = arith.cmpi ne, %10, %c0_i32_9 : i32
    scf.if %11 {
      %c0_10 = arith.constant 0 : index
      %c0_11 = arith.constant 0 : index
      %12 = vector.load %arg7[%c0_10, %c0_11] : memref<16x32xf32, #tpu.memory_space<vmem>>, vector<16x32xf32>
      %c0_12 = arith.constant 0 : index
      %c0_13 = arith.constant 0 : index
      %13 = vector.load %arg5[%c0_12, %c0_13] : memref<1x32xf32, #tpu.memory_space<vmem>>, vector<1x32xf32>
      %14 = vector.broadcast %13 : vector<1x32xf32> to vector<16x32xf32>
      %15 = arith.addf %12, %14 : vector<16x32xf32>
      %c0_14 = arith.constant 0 : index
      %c0_15 = arith.constant 0 : index
      %16 = vector.load %arg6[%c0_14, %c0_15] : memref<16x32xf32, #tpu.memory_space<vmem>>, vector<16x32xf32>
      tpu.vector_store %arg6[%c0_14, %c0_15], %15 {strides = array<i32>} : memref<16x32xf32, #tpu.memory_space<vmem>>, vector<16x32xf32>,
    } else {
    }
    return
  }
  func.func @transform_0(%arg0: i32, %arg1: i32, %arg2: i32) -> (i32, i32) {
    %c0_i32 = arith.constant 0 : i32
    return %arg0, %arg2 : i32, i32
  }
  func.func @transform_1(%arg0: i32, %arg1: i32, %arg2: i32) -> (i32, i32) {
    %c0_i32 = arith.constant 0 : i32
    return %arg2, %arg1 : i32, i32
  }
  func.func @transform_2(%arg0: i32, %arg1: i32, %arg2: i32) -> (i32, i32) {
    %c0_i32 = arith.constant 0 : i32
    %c0_i32_0 = arith.constant 0 : i32
    return %c0_i32, %arg1 : i32, i32
  }
  func.func @transform_3(%arg0: i32, %arg1: i32, %arg2: i32) -> (i32, i32) {
    %c0_i32 = arith.constant 0 : i32
    return %arg0, %arg1 : i32, i32
  }
}

module attributes {stable_mosaic.version = 11 : i64} {
  func.func @_flash_attn_kernel(%arg0: i32, %arg1: i32, %arg2: i32, %arg3: memref<1x8x32xf32, #tpu.memory_space<vmem>>, %arg4: memref<1x8x32xf32, #tpu.memory_space<vmem>>, %arg5: memref<1x8x32xf32, #tpu.memory_space<vmem>>, %arg6: memref<1x8x32xf32, #tpu.memory_space<vmem>>, %arg7: memref<4x8x1xf32, #tpu.memory_space<vmem>>, %arg8: memref<4x8x1xf32, #tpu.memory_space<vmem>>, %arg9: memref<4x8x8xf32, #tpu.memory_space<vmem>>) attributes {dimension_semantics = [#tpu.dimension_semantics<parallel>, #tpu.dimension_semantics<parallel>, #tpu.dimension_semantics<arbitrary>], iteration_bounds = array<i64: 2, 1, 1>, scalar_prefetch = 0 : i64, scratch_operands = 3 : i64, tpu.core_type = #tpu.core_type<tc>, window_params = [{transform_indices = @transform_0, window_bounds = array<i64: 1, 8, 32>}, {transform_indices = @transform_1, window_bounds = array<i64: 1, 8, 32>}, {transform_indices = @transform_2, window_bounds = array<i64: 1, 8, 32>}, {transform_indices = @transform_3, window_bounds = array<i64: 1, 8, 32>}]} {
    %c0_i32 = arith.constant 0 : i32
    %0 = arith.cmpi eq, %arg2, %c0_i32 : i32
    %1 = arith.extui %0 : i1 to i32
    %c0_i32_0 = arith.constant 0 : i32
    %2 = arith.cmpi ne, %1, %c0_i32_0 : i32
    scf.if %2 {
      %cst = arith.constant 0xFF800000 : f32
      %12 = vector.broadcast %cst : f32 to vector<4x8x1xf32>
      %c0 = arith.constant 0 : index
      %c0_5 = arith.constant 0 : index
      %c0_6 = arith.constant 0 : index
      %13 = vector.load %arg7[%c0, %c0_5, %c0_6] : memref<4x8x1xf32, #tpu.memory_space<vmem>>, vector<4x8x1xf32>
      tpu.vector_store %arg7[%c0, %c0_5, %c0_6], %12 {strides = array<i32>} : memref<4x8x1xf32, #tpu.memory_space<vmem>>, vector<4x8x1xf32>,
      %cst_7 = arith.constant 0.000000e+00 : f32
      %14 = vector.broadcast %cst_7 : f32 to vector<4x8x1xf32>
      %c0_8 = arith.constant 0 : index
      %c0_9 = arith.constant 0 : index
      %c0_10 = arith.constant 0 : index
      %15 = vector.load %arg8[%c0_8, %c0_9, %c0_10] : memref<4x8x1xf32, #tpu.memory_space<vmem>>, vector<4x8x1xf32>
      tpu.vector_store %arg8[%c0_8, %c0_9, %c0_10], %14 {strides = array<i32>} : memref<4x8x1xf32, #tpu.memory_space<vmem>>, vector<4x8x1xf32>,
      %cst_11 = arith.constant 0.000000e+00 : f32
      %16 = vector.broadcast %cst_11 : f32 to vector<4x8x8xf32>
      %c0_12 = arith.constant 0 : index
      %c0_13 = arith.constant 0 : index
      %c0_14 = arith.constant 0 : index
      %17 = vector.load %arg9[%c0_12, %c0_13, %c0_14] : memref<4x8x8xf32, #tpu.memory_space<vmem>>, vector<4x8x8xf32>
      tpu.vector_store %arg9[%c0_12, %c0_13, %c0_14], %16 {strides = array<i32>} : memref<4x8x8xf32, #tpu.memory_space<vmem>>, vector<4x8x8xf32>,
    } else {
    }
    %c8_i32 = arith.constant 8 : i32
    %3 = arith.muli %arg2, %c8_i32 : i32
    %c8_i32_1 = arith.constant 8 : i32
    %4 = arith.muli %arg1, %c8_i32_1 : i32
    %c7_i32 = arith.constant 7 : i32
    %5 = arith.addi %4, %c7_i32 : i32
    %6 = arith.cmpi sle, %3, %5 : i32
    %7 = arith.extui %6 : i1 to i32
    %c0_i32_2 = arith.constant 0 : i32
    %8 = arith.cmpi ne, %7, %c0_i32_2 : i32
    scf.if %8 {
      %c0 = arith.constant 0 : index
      %c0_5 = arith.constant 0 : index
      %c0_6 = arith.constant 0 : index
      %12 = vector.load %arg3[%c0, %c0_5, %c0_6] : memref<1x8x32xf32, #tpu.memory_space<vmem>>, vector<1x8x32xf32>
      %13 = vector.shape_cast %12 : vector<1x8x32xf32> to vector<8x32xf32>
      %cst = arith.constant 0.353553385 : f32
      %14 = vector.broadcast %cst : f32 to vector<8x32xf32>
      %15 = arith.mulf %13, %14 : vector<8x32xf32>
      %c0_7 = arith.constant 0 : index
      %c0_8 = arith.constant 0 : index
      %c0_9 = arith.constant 0 : index
      %16 = vector.load %arg4[%c0_7, %c0_8, %c0_9] : memref<1x8x32xf32, #tpu.memory_space<vmem>>, vector<1x8x32xf32>
      %17 = vector.shape_cast %16 : vector<1x8x32xf32> to vector<8x32xf32>
      %c0_10 = arith.constant 0 : index
      %c0_11 = arith.constant 0 : index
      %c0_12 = arith.constant 0 : index
      %18 = vector.load %arg5[%c0_10, %c0_11, %c0_12] : memref<1x8x32xf32, #tpu.memory_space<vmem>>, vector<1x8x32xf32>
      %19 = vector.shape_cast %18 : vector<1x8x32xf32> to vector<8x32xf32>
      %c8_i32_13 = arith.constant 8 : i32
      %20 = arith.muli %arg1, %c8_i32_13 : i32
      %21 = tpu.iota {dimensions = array<i32: 0>} : vector<8x8xi32>
      %22 = vector.broadcast %20 : i32 to vector<8x8xi32>
      %23 = arith.addi %22, %21 : vector<8x8xi32>
      %c8_i32_14 = arith.constant 8 : i32
      %24 = arith.muli %arg2, %c8_i32_14 : i32
      %25 = tpu.iota {dimensions = array<i32: 1>} : vector<8x8xi32>
      %26 = vector.broadcast %24 : i32 to vector<8x8xi32>
      %27 = arith.addi %26, %25 : vector<8x8xi32>
      %28 = arith.cmpi sge, %23, %27 : vector<8x8xi32>
      %29 = vector.extract_strided_slice %15 {offsets = [0, 0], sizes = [8, 8], strides = [1, 1]} : vector<8x32xf32> to vector<8x8xf32>
      %30 = vector.extract_strided_slice %17 {offsets = [0, 0], sizes = [8, 8], strides = [1, 1]} : vector<8x32xf32> to vector<8x8xf32>
      %cst_15 = arith.constant dense<0.000000e+00> : vector<8x8xf32>
      %31 = tpu.matmul %29, %30, %cst_15 {dimension_numbers = #tpu.dot_dimension_numbers<[1], [1], [0], [0], [0, 0, 1, 0], [], []>} : vector<8x8xf32>, vector<8x8xf32>, vector<8x8xf32> -> vector<8x8xf32>
      %cst_16 = arith.constant 0xFF800000 : f32
      %32 = vector.broadcast %cst_16 : f32 to vector<8x8xf32>
      %33 = arith.select %28, %31, %32 : vector<8x8xi1>, vector<8x8xf32>
      %c0_17 = arith.constant 0 : index
      %c0_18 = arith.constant 0 : index
      %c0_19 = arith.constant 0 : index
      %34 = vector.load %arg7[%c0_17, %c0_18, %c0_19] : memref<4x8x1xf32, #tpu.memory_space<vmem>>, vector<1x8x1xf32>
      %35 = vector.shape_cast %34 : vector<1x8x1xf32> to vector<8x1xf32>
      %cst_20 = arith.constant dense<0xFF800000> : vector<8xf32>
      %36 = vector.multi_reduction <maximumf>, %33, %cst_20 [1] : vector<8x8xf32> to vector<8xf32>
      %37 = vector.shape_cast %36 : vector<8xf32> to vector<8x1xf32>
      %38 = arith.maximumf %35, %37 : vector<8x1xf32>
      %39 = arith.subf %35, %38 : vector<8x1xf32>
      %40 = math.exp %39 : vector<8x1xf32>
      %41 = vector.broadcast %38 : vector<8x1xf32> to vector<8x8xf32>
      %42 = arith.subf %33, %41 : vector<8x8xf32>
      %43 = math.exp %42 : vector<8x8xf32>
      %c0_21 = arith.constant 0 : index
      %c0_22 = arith.constant 0 : index
      %c0_23 = arith.constant 0 : index
      %44 = vector.load %arg8[%c0_21, %c0_22, %c0_23] : memref<4x8x1xf32, #tpu.memory_space<vmem>>, vector<1x8x1xf32>
      %45 = vector.shape_cast %44 : vector<1x8x1xf32> to vector<8x1xf32>
      %46 = arith.mulf %40, %45 : vector<8x1xf32>
      %cst_24 = arith.constant dense<0.000000e+00> : vector<8xf32>
      %47 = vector.multi_reduction <add>, %43, %cst_24 [1] : vector<8x8xf32> to vector<8xf32>
      %48 = vector.shape_cast %47 : vector<8xf32> to vector<8x1xf32>
      %49 = arith.addf %46, %48 : vector<8x1xf32>
      %c0_25 = arith.constant 0 : index
      %c0_26 = arith.constant 0 : index
      %c0_27 = arith.constant 0 : index
      %50 = vector.load %arg8[%c0_25, %c0_26, %c0_27] : memref<4x8x1xf32, #tpu.memory_space<vmem>>, vector<1x8x1xf32>
      %51 = vector.shape_cast %50 : vector<1x8x1xf32> to vector<8x1xf32>
      %52 = vector.shape_cast %49 : vector<8x1xf32> to vector<1x8x1xf32>
      tpu.vector_store %arg8[%c0_25, %c0_26, %c0_27], %52 {strides = array<i32>} : memref<4x8x1xf32, #tpu.memory_space<vmem>>, vector<1x8x1xf32>,
      %c0_28 = arith.constant 0 : index
      %c0_29 = arith.constant 0 : index
      %c0_30 = arith.constant 0 : index
      %53 = vector.load %arg9[%c0_28, %c0_29, %c0_30] : memref<4x8x8xf32, #tpu.memory_space<vmem>>, vector<1x8x8xf32>
      %54 = vector.shape_cast %53 : vector<1x8x8xf32> to vector<8x8xf32>
      %55 = vector.broadcast %40 : vector<8x1xf32> to vector<8x8xf32>
      %56 = arith.mulf %55, %54 : vector<8x8xf32>
      %57 = vector.extract_strided_slice %19 {offsets = [0, 0], sizes = [8, 8], strides = [1, 1]} : vector<8x32xf32> to vector<8x8xf32>
      %cst_31 = arith.constant dense<0.000000e+00> : vector<8x8xf32>
      %58 = tpu.matmul %43, %57, %cst_31 {dimension_numbers = #tpu.dot_dimension_numbers<[1], [0], [0], [1], [0, 0, 1, 1], [], []>} : vector<8x8xf32>, vector<8x8xf32>, vector<8x8xf32> -> vector<8x8xf32>
      %59 = arith.addf %56, %58 : vector<8x8xf32>
      %c0_32 = arith.constant 0 : index
      %c0_33 = arith.constant 0 : index
      %c0_34 = arith.constant 0 : index
      %60 = vector.load %arg9[%c0_32, %c0_33, %c0_34] : memref<4x8x8xf32, #tpu.memory_space<vmem>>, vector<1x8x8xf32>
      %61 = vector.shape_cast %60 : vector<1x8x8xf32> to vector<8x8xf32>
      %62 = vector.shape_cast %59 : vector<8x8xf32> to vector<1x8x8xf32>
      tpu.vector_store %arg9[%c0_32, %c0_33, %c0_34], %62 {strides = array<i32>} : memref<4x8x8xf32, #tpu.memory_space<vmem>>, vector<1x8x8xf32>,
      %c0_35 = arith.constant 0 : index
      %c0_36 = arith.constant 0 : index
      %c0_37 = arith.constant 0 : index
      %63 = vector.load %arg7[%c0_35, %c0_36, %c0_37] : memref<4x8x1xf32, #tpu.memory_space<vmem>>, vector<1x8x1xf32>
      %64 = vector.shape_cast %63 : vector<1x8x1xf32> to vector<8x1xf32>
      %65 = vector.shape_cast %38 : vector<8x1xf32> to vector<1x8x1xf32>
      tpu.vector_store %arg7[%c0_35, %c0_36, %c0_37], %65 {strides = array<i32>} : memref<4x8x1xf32, #tpu.memory_space<vmem>>, vector<1x8x1xf32>,
      %66 = vector.extract_strided_slice %15 {offsets = [0, 8], sizes = [8, 8], strides = [1, 1]} : vector<8x32xf32> to vector<8x8xf32>
      %67 = vector.extract_strided_slice %17 {offsets = [0, 8], sizes = [8, 8], strides = [1, 1]} : vector<8x32xf32> to vector<8x8xf32>
      %cst_38 = arith.constant dense<0.000000e+00> : vector<8x8xf32>
      %68 = tpu.matmul %66, %67, %cst_38 {dimension_numbers = #tpu.dot_dimension_numbers<[1], [1], [0], [0], [0, 0, 1, 0], [], []>} : vector<8x8xf32>, vector<8x8xf32>, vector<8x8xf32> -> vector<8x8xf32>
      %cst_39 = arith.constant 0xFF800000 : f32
      %69 = vector.broadcast %cst_39 : f32 to vector<8x8xf32>
      %70 = arith.select %28, %68, %69 : vector<8x8xi1>, vector<8x8xf32>
      %c1 = arith.constant 1 : index
      %c0_40 = arith.constant 0 : index
      %c0_41 = arith.constant 0 : index
      %71 = vector.load %arg7[%c1, %c0_40, %c0_41] : memref<4x8x1xf32, #tpu.memory_space<vmem>>, vector<1x8x1xf32>
      %72 = vector.shape_cast %71 : vector<1x8x1xf32> to vector<8x1xf32>
      %cst_42 = arith.constant dense<0xFF800000> : vector<8xf32>
      %73 = vector.multi_reduction <maximumf>, %70, %cst_42 [1] : vector<8x8xf32> to vector<8xf32>
      %74 = vector.shape_cast %73 : vector<8xf32> to vector<8x1xf32>
      %75 = arith.maximumf %72, %74 : vector<8x1xf32>
      %76 = arith.subf %72, %75 : vector<8x1xf32>
      %77 = math.exp %76 : vector<8x1xf32>
      %78 = vector.broadcast %75 : vector<8x1xf32> to vector<8x8xf32>
      %79 = arith.subf %70, %78 : vector<8x8xf32>
      %80 = math.exp %79 : vector<8x8xf32>
      %c1_43 = arith.constant 1 : index
      %c0_44 = arith.constant 0 : index
      %c0_45 = arith.constant 0 : index
      %81 = vector.load %arg8[%c1_43, %c0_44, %c0_45] : memref<4x8x1xf32, #tpu.memory_space<vmem>>, vector<1x8x1xf32>
      %82 = vector.shape_cast %81 : vector<1x8x1xf32> to vector<8x1xf32>
      %83 = arith.mulf %77, %82 : vector<8x1xf32>
      %cst_46 = arith.constant dense<0.000000e+00> : vector<8xf32>
      %84 = vector.multi_reduction <add>, %80, %cst_46 [1] : vector<8x8xf32> to vector<8xf32>
      %85 = vector.shape_cast %84 : vector<8xf32> to vector<8x1xf32>
      %86 = arith.addf %83, %85 : vector<8x1xf32>
      %c1_47 = arith.constant 1 : index
      %c0_48 = arith.constant 0 : index
      %c0_49 = arith.constant 0 : index
      %87 = vector.load %arg8[%c1_47, %c0_48, %c0_49] : memref<4x8x1xf32, #tpu.memory_space<vmem>>, vector<1x8x1xf32>
      %88 = vector.shape_cast %87 : vector<1x8x1xf32> to vector<8x1xf32>
      %89 = vector.shape_cast %86 : vector<8x1xf32> to vector<1x8x1xf32>
      tpu.vector_store %arg8[%c1_47, %c0_48, %c0_49], %89 {strides = array<i32>} : memref<4x8x1xf32, #tpu.memory_space<vmem>>, vector<1x8x1xf32>,
      %c1_50 = arith.constant 1 : index
      %c0_51 = arith.constant 0 : index
      %c0_52 = arith.constant 0 : index
      %90 = vector.load %arg9[%c1_50, %c0_51, %c0_52] : memref<4x8x8xf32, #tpu.memory_space<vmem>>, vector<1x8x8xf32>
      %91 = vector.shape_cast %90 : vector<1x8x8xf32> to vector<8x8xf32>
      %92 = vector.broadcast %77 : vector<8x1xf32> to vector<8x8xf32>
      %93 = arith.mulf %92, %91 : vector<8x8xf32>
      %94 = vector.extract_strided_slice %19 {offsets = [0, 8], sizes = [8, 8], strides = [1, 1]} : vector<8x32xf32> to vector<8x8xf32>
      %cst_53 = arith.constant dense<0.000000e+00> : vector<8x8xf32>
      %95 = tpu.matmul %80, %94, %cst_53 {dimension_numbers = #tpu.dot_dimension_numbers<[1], [0], [0], [1], [0, 0, 1, 1], [], []>} : vector<8x8xf32>, vector<8x8xf32>, vector<8x8xf32> -> vector<8x8xf32>
      %96 = arith.addf %93, %95 : vector<8x8xf32>
      %c1_54 = arith.constant 1 : index
      %c0_55 = arith.constant 0 : index
      %c0_56 = arith.constant 0 : index
      %97 = vector.load %arg9[%c1_54, %c0_55, %c0_56] : memref<4x8x8xf32, #tpu.memory_space<vmem>>, vector<1x8x8xf32>
      %98 = vector.shape_cast %97 : vector<1x8x8xf32> to vector<8x8xf32>
      %99 = vector.shape_cast %96 : vector<8x8xf32> to vector<1x8x8xf32>
      tpu.vector_store %arg9[%c1_54, %c0_55, %c0_56], %99 {strides = array<i32>} : memref<4x8x8xf32, #tpu.memory_space<vmem>>, vector<1x8x8xf32>,
      %c1_57 = arith.constant 1 : index
      %c0_58 = arith.constant 0 : index
      %c0_59 = arith.constant 0 : index
      %100 = vector.load %arg7[%c1_57, %c0_58, %c0_59] : memref<4x8x1xf32, #tpu.memory_space<vmem>>, vector<1x8x1xf32>
      %101 = vector.shape_cast %100 : vector<1x8x1xf32> to vector<8x1xf32>
      %102 = vector.shape_cast %75 : vector<8x1xf32> to vector<1x8x1xf32>
      tpu.vector_store %arg7[%c1_57, %c0_58, %c0_59], %102 {strides = array<i32>} : memref<4x8x1xf32, #tpu.memory_space<vmem>>, vector<1x8x1xf32>,
      %103 = vector.extract_strided_slice %15 {offsets = [0, 16], sizes = [8, 8], strides = [1, 1]} : vector<8x32xf32> to vector<8x8xf32>
      %104 = vector.extract_strided_slice %17 {offsets = [0, 16], sizes = [8, 8], strides = [1, 1]} : vector<8x32xf32> to vector<8x8xf32>
      %cst_60 = arith.constant dense<0.000000e+00> : vector<8x8xf32>
      %105 = tpu.matmul %103, %104, %cst_60 {dimension_numbers = #tpu.dot_dimension_numbers<[1], [1], [0], [0], [0, 0, 1, 0], [], []>} : vector<8x8xf32>, vector<8x8xf32>, vector<8x8xf32> -> vector<8x8xf32>
      %cst_61 = arith.constant 0xFF800000 : f32
      %106 = vector.broadcast %cst_61 : f32 to vector<8x8xf32>
      %107 = arith.select %28, %105, %106 : vector<8x8xi1>, vector<8x8xf32>
      %c2 = arith.constant 2 : index
      %c0_62 = arith.constant 0 : index
      %c0_63 = arith.constant 0 : index
      %108 = vector.load %arg7[%c2, %c0_62, %c0_63] : memref<4x8x1xf32, #tpu.memory_space<vmem>>, vector<1x8x1xf32>
      %109 = vector.shape_cast %108 : vector<1x8x1xf32> to vector<8x1xf32>
      %cst_64 = arith.constant dense<0xFF800000> : vector<8xf32>
      %110 = vector.multi_reduction <maximumf>, %107, %cst_64 [1] : vector<8x8xf32> to vector<8xf32>
      %111 = vector.shape_cast %110 : vector<8xf32> to vector<8x1xf32>
      %112 = arith.maximumf %109, %111 : vector<8x1xf32>
      %113 = arith.subf %109, %112 : vector<8x1xf32>
      %114 = math.exp %113 : vector<8x1xf32>
      %115 = vector.broadcast %112 : vector<8x1xf32> to vector<8x8xf32>
      %116 = arith.subf %107, %115 : vector<8x8xf32>
      %117 = math.exp %116 : vector<8x8xf32>
      %c2_65 = arith.constant 2 : index
      %c0_66 = arith.constant 0 : index
      %c0_67 = arith.constant 0 : index
      %118 = vector.load %arg8[%c2_65, %c0_66, %c0_67] : memref<4x8x1xf32, #tpu.memory_space<vmem>>, vector<1x8x1xf32>
      %119 = vector.shape_cast %118 : vector<1x8x1xf32> to vector<8x1xf32>
      %120 = arith.mulf %114, %119 : vector<8x1xf32>
      %cst_68 = arith.constant dense<0.000000e+00> : vector<8xf32>
      %121 = vector.multi_reduction <add>, %117, %cst_68 [1] : vector<8x8xf32> to vector<8xf32>
      %122 = vector.shape_cast %121 : vector<8xf32> to vector<8x1xf32>
      %123 = arith.addf %120, %122 : vector<8x1xf32>
      %c2_69 = arith.constant 2 : index
      %c0_70 = arith.constant 0 : index
      %c0_71 = arith.constant 0 : index
      %124 = vector.load %arg8[%c2_69, %c0_70, %c0_71] : memref<4x8x1xf32, #tpu.memory_space<vmem>>, vector<1x8x1xf32>
      %125 = vector.shape_cast %124 : vector<1x8x1xf32> to vector<8x1xf32>
      %126 = vector.shape_cast %123 : vector<8x1xf32> to vector<1x8x1xf32>
      tpu.vector_store %arg8[%c2_69, %c0_70, %c0_71], %126 {strides = array<i32>} : memref<4x8x1xf32, #tpu.memory_space<vmem>>, vector<1x8x1xf32>,
      %c2_72 = arith.constant 2 : index
      %c0_73 = arith.constant 0 : index
      %c0_74 = arith.constant 0 : index
      %127 = vector.load %arg9[%c2_72, %c0_73, %c0_74] : memref<4x8x8xf32, #tpu.memory_space<vmem>>, vector<1x8x8xf32>
      %128 = vector.shape_cast %127 : vector<1x8x8xf32> to vector<8x8xf32>
      %129 = vector.broadcast %114 : vector<8x1xf32> to vector<8x8xf32>
      %130 = arith.mulf %129, %128 : vector<8x8xf32>
      %131 = vector.extract_strided_slice %19 {offsets = [0, 16], sizes = [8, 8], strides = [1, 1]} : vector<8x32xf32> to vector<8x8xf32>
      %cst_75 = arith.constant dense<0.000000e+00> : vector<8x8xf32>
      %132 = tpu.matmul %117, %131, %cst_75 {dimension_numbers = #tpu.dot_dimension_numbers<[1], [0], [0], [1], [0, 0, 1, 1], [], []>} : vector<8x8xf32>, vector<8x8xf32>, vector<8x8xf32> -> vector<8x8xf32>
      %133 = arith.addf %130, %132 : vector<8x8xf32>
      %c2_76 = arith.constant 2 : index
      %c0_77 = arith.constant 0 : index
      %c0_78 = arith.constant 0 : index
      %134 = vector.load %arg9[%c2_76, %c0_77, %c0_78] : memref<4x8x8xf32, #tpu.memory_space<vmem>>, vector<1x8x8xf32>
      %135 = vector.shape_cast %134 : vector<1x8x8xf32> to vector<8x8xf32>
      %136 = vector.shape_cast %133 : vector<8x8xf32> to vector<1x8x8xf32>
      tpu.vector_store %arg9[%c2_76, %c0_77, %c0_78], %136 {strides = array<i32>} : memref<4x8x8xf32, #tpu.memory_space<vmem>>, vector<1x8x8xf32>,
      %c2_79 = arith.constant 2 : index
      %c0_80 = arith.constant 0 : index
      %c0_81 = arith.constant 0 : index
      %137 = vector.load %arg7[%c2_79, %c0_80, %c0_81] : memref<4x8x1xf32, #tpu.memory_space<vmem>>, vector<1x8x1xf32>
      %138 = vector.shape_cast %137 : vector<1x8x1xf32> to vector<8x1xf32>
      %139 = vector.shape_cast %112 : vector<8x1xf32> to vector<1x8x1xf32>
      tpu.vector_store %arg7[%c2_79, %c0_80, %c0_81], %139 {strides = array<i32>} : memref<4x8x1xf32, #tpu.memory_space<vmem>>, vector<1x8x1xf32>,
      %140 = vector.extract_strided_slice %15 {offsets = [0, 24], sizes = [8, 8], strides = [1, 1]} : vector<8x32xf32> to vector<8x8xf32>
      %141 = vector.extract_strided_slice %17 {offsets = [0, 24], sizes = [8, 8], strides = [1, 1]} : vector<8x32xf32> to vector<8x8xf32>
      %cst_82 = arith.constant dense<0.000000e+00> : vector<8x8xf32>
      %142 = tpu.matmul %140, %141, %cst_82 {dimension_numbers = #tpu.dot_dimension_numbers<[1], [1], [0], [0], [0, 0, 1, 0], [], []>} : vector<8x8xf32>, vector<8x8xf32>, vector<8x8xf32> -> vector<8x8xf32>
      %cst_83 = arith.constant 0xFF800000 : f32
      %143 = vector.broadcast %cst_83 : f32 to vector<8x8xf32>
      %144 = arith.select %28, %142, %143 : vector<8x8xi1>, vector<8x8xf32>
      %c3 = arith.constant 3 : index
      %c0_84 = arith.constant 0 : index
      %c0_85 = arith.constant 0 : index
      %145 = vector.load %arg7[%c3, %c0_84, %c0_85] : memref<4x8x1xf32, #tpu.memory_space<vmem>>, vector<1x8x1xf32>
      %146 = vector.shape_cast %145 : vector<1x8x1xf32> to vector<8x1xf32>
      %cst_86 = arith.constant dense<0xFF800000> : vector<8xf32>
      %147 = vector.multi_reduction <maximumf>, %144, %cst_86 [1] : vector<8x8xf32> to vector<8xf32>
      %148 = vector.shape_cast %147 : vector<8xf32> to vector<8x1xf32>
      %149 = arith.maximumf %146, %148 : vector<8x1xf32>
      %150 = arith.subf %146, %149 : vector<8x1xf32>
      %151 = math.exp %150 : vector<8x1xf32>
      %152 = vector.broadcast %149 : vector<8x1xf32> to vector<8x8xf32>
      %153 = arith.subf %144, %152 : vector<8x8xf32>
      %154 = math.exp %153 : vector<8x8xf32>
      %c3_87 = arith.constant 3 : index
      %c0_88 = arith.constant 0 : index
      %c0_89 = arith.constant 0 : index
      %155 = vector.load %arg8[%c3_87, %c0_88, %c0_89] : memref<4x8x1xf32, #tpu.memory_space<vmem>>, vector<1x8x1xf32>
      %156 = vector.shape_cast %155 : vector<1x8x1xf32> to vector<8x1xf32>
      %157 = arith.mulf %151, %156 : vector<8x1xf32>
      %cst_90 = arith.constant dense<0.000000e+00> : vector<8xf32>
      %158 = vector.multi_reduction <add>, %154, %cst_90 [1] : vector<8x8xf32> to vector<8xf32>
      %159 = vector.shape_cast %158 : vector<8xf32> to vector<8x1xf32>
      %160 = arith.addf %157, %159 : vector<8x1xf32>
      %c3_91 = arith.constant 3 : index
      %c0_92 = arith.constant 0 : index
      %c0_93 = arith.constant 0 : index
      %161 = vector.load %arg8[%c3_91, %c0_92, %c0_93] : memref<4x8x1xf32, #tpu.memory_space<vmem>>, vector<1x8x1xf32>
      %162 = vector.shape_cast %161 : vector<1x8x1xf32> to vector<8x1xf32>
      %163 = vector.shape_cast %160 : vector<8x1xf32> to vector<1x8x1xf32>
      tpu.vector_store %arg8[%c3_91, %c0_92, %c0_93], %163 {strides = array<i32>} : memref<4x8x1xf32, #tpu.memory_space<vmem>>, vector<1x8x1xf32>,
      %c3_94 = arith.constant 3 : index
      %c0_95 = arith.constant 0 : index
      %c0_96 = arith.constant 0 : index
      %164 = vector.load %arg9[%c3_94, %c0_95, %c0_96] : memref<4x8x8xf32, #tpu.memory_space<vmem>>, vector<1x8x8xf32>
      %165 = vector.shape_cast %164 : vector<1x8x8xf32> to vector<8x8xf32>
      %166 = vector.broadcast %151 : vector<8x1xf32> to vector<8x8xf32>
      %167 = arith.mulf %166, %165 : vector<8x8xf32>
      %168 = vector.extract_strided_slice %19 {offsets = [0, 24], sizes = [8, 8], strides = [1, 1]} : vector<8x32xf32> to vector<8x8xf32>
      %cst_97 = arith.constant dense<0.000000e+00> : vector<8x8xf32>
      %169 = tpu.matmul %154, %168, %cst_97 {dimension_numbers = #tpu.dot_dimension_numbers<[1], [0], [0], [1], [0, 0, 1, 1], [], []>} : vector<8x8xf32>, vector<8x8xf32>, vector<8x8xf32> -> vector<8x8xf32>
      %170 = arith.addf %167, %169 : vector<8x8xf32>
      %c3_98 = arith.constant 3 : index
      %c0_99 = arith.constant 0 : index
      %c0_100 = arith.constant 0 : index
      %171 = vector.load %arg9[%c3_98, %c0_99, %c0_100] : memref<4x8x8xf32, #tpu.memory_space<vmem>>, vector<1x8x8xf32>
      %172 = vector.shape_cast %171 : vector<1x8x8xf32> to vector<8x8xf32>
      %173 = vector.shape_cast %170 : vector<8x8xf32> to vector<1x8x8xf32>
      tpu.vector_store %arg9[%c3_98, %c0_99, %c0_100], %173 {strides = array<i32>} : memref<4x8x8xf32, #tpu.memory_space<vmem>>, vector<1x8x8xf32>,
      %c3_101 = arith.constant 3 : index
      %c0_102 = arith.constant 0 : index
      %c0_103 = arith.constant 0 : index
      %174 = vector.load %arg7[%c3_101, %c0_102, %c0_103] : memref<4x8x1xf32, #tpu.memory_space<vmem>>, vector<1x8x1xf32>
      %175 = vector.shape_cast %174 : vector<1x8x1xf32> to vector<8x1xf32>
      %176 = vector.shape_cast %149 : vector<8x1xf32> to vector<1x8x1xf32>
      tpu.vector_store %arg7[%c3_101, %c0_102, %c0_103], %176 {strides = array<i32>} : memref<4x8x1xf32, #tpu.memory_space<vmem>>, vector<1x8x1xf32>,
    } else {
    }
    %c0_i32_3 = arith.constant 0 : i32
    %9 = arith.cmpi eq, %arg2, %c0_i32_3 : i32
    %10 = arith.extui %9 : i1 to i32
    %c0_i32_4 = arith.constant 0 : i32
    %11 = arith.cmpi ne, %10, %c0_i32_4 : i32
    scf.if %11 {
      %c0 = arith.constant 0 : index
      %c0_5 = arith.constant 0 : index
      %c0_6 = arith.constant 0 : index
      %12 = vector.load %arg9[%c0, %c0_5, %c0_6] : memref<4x8x8xf32, #tpu.memory_space<vmem>>, vector<1x8x8xf32>
      %13 = vector.shape_cast %12 : vector<1x8x8xf32> to vector<8x8xf32>
      %c0_7 = arith.constant 0 : index
      %c0_8 = arith.constant 0 : index
      %c0_9 = arith.constant 0 : index
      %14 = vector.load %arg8[%c0_7, %c0_8, %c0_9] : memref<4x8x1xf32, #tpu.memory_space<vmem>>, vector<1x8x1xf32>
      %15 = vector.shape_cast %14 : vector<1x8x1xf32> to vector<8x1xf32>
      %16 = tpu.reciprocal %15 {approx = true} : vector<8x1xf32> -> vector<8x1xf32>
      %17 = vector.broadcast %16 : vector<8x1xf32> to vector<8x8xf32>
      %18 = arith.mulf %13, %17 : vector<8x8xf32>
      %c1 = arith.constant 1 : index
      %c0_10 = arith.constant 0 : index
      %c0_11 = arith.constant 0 : index
      %19 = vector.load %arg9[%c1, %c0_10, %c0_11] : memref<4x8x8xf32, #tpu.memory_space<vmem>>, vector<1x8x8xf32>
      %20 = vector.shape_cast %19 : vector<1x8x8xf32> to vector<8x8xf32>
      %c1_12 = arith.constant 1 : index
      %c0_13 = arith.constant 0 : index
      %c0_14 = arith.constant 0 : index
      %21 = vector.load %arg8[%c1_12, %c0_13, %c0_14] : memref<4x8x1xf32, #tpu.memory_space<vmem>>, vector<1x8x1xf32>
      %22 = vector.shape_cast %21 : vector<1x8x1xf32> to vector<8x1xf32>
      %23 = tpu.reciprocal %22 {approx = true} : vector<8x1xf32> -> vector<8x1xf32>
      %24 = vector.broadcast %23 : vector<8x1xf32> to vector<8x8xf32>
      %25 = arith.mulf %20, %24 : vector<8x8xf32>
      %c2 = arith.constant 2 : index
      %c0_15 = arith.constant 0 : index
      %c0_16 = arith.constant 0 : index
      %26 = vector.load %arg9[%c2, %c0_15, %c0_16] : memref<4x8x8xf32, #tpu.memory_space<vmem>>, vector<1x8x8xf32>
      %27 = vector.shape_cast %26 : vector<1x8x8xf32> to vector<8x8xf32>
      %c2_17 = arith.constant 2 : index
      %c0_18 = arith.constant 0 : index
      %c0_19 = arith.constant 0 : index
      %28 = vector.load %arg8[%c2_17, %c0_18, %c0_19] : memref<4x8x1xf32, #tpu.memory_space<vmem>>, vector<1x8x1xf32>
      %29 = vector.shape_cast %28 : vector<1x8x1xf32> to vector<8x1xf32>
      %30 = tpu.reciprocal %29 {approx = true} : vector<8x1xf32> -> vector<8x1xf32>
      %31 = vector.broadcast %30 : vector<8x1xf32> to vector<8x8xf32>
      %32 = arith.mulf %27, %31 : vector<8x8xf32>
      %c3 = arith.constant 3 : index
      %c0_20 = arith.constant 0 : index
      %c0_21 = arith.constant 0 : index
      %33 = vector.load %arg9[%c3, %c0_20, %c0_21] : memref<4x8x8xf32, #tpu.memory_space<vmem>>, vector<1x8x8xf32>
      %34 = vector.shape_cast %33 : vector<1x8x8xf32> to vector<8x8xf32>
      %c3_22 = arith.constant 3 : index
      %c0_23 = arith.constant 0 : index
      %c0_24 = arith.constant 0 : index
      %35 = vector.load %arg8[%c3_22, %c0_23, %c0_24] : memref<4x8x1xf32, #tpu.memory_space<vmem>>, vector<1x8x1xf32>
      %36 = vector.shape_cast %35 : vector<1x8x1xf32> to vector<8x1xf32>
      %37 = tpu.reciprocal %36 {approx = true} : vector<8x1xf32> -> vector<8x1xf32>
      %38 = vector.broadcast %37 : vector<8x1xf32> to vector<8x8xf32>
      %39 = arith.mulf %34, %38 : vector<8x8xf32>
      %40 = tpu.concatenate %18, %25, %32, %39 in 1 : vector<8x8xf32>, vector<8x8xf32>, vector<8x8xf32>, vector<8x8xf32> -> vector<8x32xf32>
      %c0_25 = arith.constant 0 : index
      %c0_26 = arith.constant 0 : index
      %c0_27 = arith.constant 0 : index
      %41 = vector.load %arg6[%c0_25, %c0_26, %c0_27] : memref<1x8x32xf32, #tpu.memory_space<vmem>>, vector<1x8x32xf32>
      %42 = vector.shape_cast %41 : vector<1x8x32xf32> to vector<8x32xf32>
      %43 = vector.shape_cast %40 : vector<8x32xf32> to vector<1x8x32xf32>
      tpu.vector_store %arg6[%c0_25, %c0_26, %c0_27], %43 {strides = array<i32>} : memref<1x8x32xf32, #tpu.memory_space<vmem>>, vector<1x8x32xf32>,
    } else {
    }
    return
  }
  func.func @transform_0(%arg0: i32, %arg1: i32, %arg2: i32) -> (i32, i32, i32) {
    %c0_i32 = arith.constant 0 : i32
    %c0_i32_0 = arith.constant 0 : i32
    return %arg0, %arg1, %c0_i32 : i32, i32, i32
  }
  func.func @transform_1(%arg0: i32, %arg1: i32, %arg2: i32) -> (i32, i32, i32) {
    %0 = arith.minsi %arg2, %arg1 : i32
    %c0_i32 = arith.constant 0 : i32
    %c0_i32_0 = arith.constant 0 : i32
    return %arg0, %0, %c0_i32 : i32, i32, i32
  }
  func.func @transform_2(%arg0: i32, %arg1: i32, %arg2: i32) -> (i32, i32, i32) {
    %0 = arith.minsi %arg2, %arg1 : i32
    %c0_i32 = arith.constant 0 : i32
    %c0_i32_0 = arith.constant 0 : i32
    return %arg0, %0, %c0_i32 : i32, i32, i32
  }
  func.func @transform_3(%arg0: i32, %arg1: i32, %arg2: i32) -> (i32, i32, i32) {
    %c0_i32 = arith.constant 0 : i32
    %c0_i32_0 = arith.constant 0 : i32
    return %arg0, %arg1, %c0_i32 : i32, i32, i32
  }
}

module attributes {stable_mosaic.version = 11 : i64} {
  func.func @_linear_kernel(%arg0: i32, %arg1: i32, %arg2: i32, %arg3: memref<16x32xf32, #tpu.memory_space<vmem>>, %arg4: memref<32x32xf32, #tpu.memory_space<vmem>>, %arg5: memref<1x32xf32, #tpu.memory_space<vmem>>, %arg6: memref<16x32xf32, #tpu.memory_space<vmem>>, %arg7: memref<16x32xf32, #tpu.memory_space<vmem>>) attributes {dimension_semantics = [#tpu.dimension_semantics<parallel>, #tpu.dimension_semantics<parallel>, #tpu.dimension_semantics<arbitrary>], iteration_bounds = array<i64: 1, 1, 1>, scalar_prefetch = 0 : i64, scratch_operands = 1 : i64, tpu.core_type = #tpu.core_type<tc>, window_params = [{transform_indices = @transform_0, window_bounds = array<i64: 16, 32>}, {transform_indices = @transform_1, window_bounds = array<i64: 32, 32>}, {transform_indices = @transform_2, window_bounds = array<i64: 1, 32>}, {transform_indices = @transform_3, window_bounds = array<i64: 16, 32>}]} {
    %c0_i32 = arith.constant 0 : i32
    %0 = arith.cmpi eq, %arg2, %c0_i32 : i32
    %1 = arith.extui %0 : i1 to i32
    %c0_i32_0 = arith.constant 0 : i32
    %2 = arith.cmpi ne, %1, %c0_i32_0 : i32
    scf.if %2 {
      %cst_10 = arith.constant 0.000000e+00 : f32
      %12 = vector.broadcast %cst_10 : f32 to vector<16x32xf32>
      %c0_11 = arith.constant 0 : index
      %c0_12 = arith.constant 0 : index
      %13 = vector.load %arg7[%c0_11, %c0_12] : memref<16x32xf32, #tpu.memory_space<vmem>>, vector<16x32xf32>
      tpu.vector_store %arg7[%c0_11, %c0_12], %12 {strides = array<i32>} : memref<16x32xf32, #tpu.memory_space<vmem>>, vector<16x32xf32>,
    } else {
    }
    %c0 = arith.constant 0 : index
    %c0_1 = arith.constant 0 : index
    %3 = vector.load %arg7[%c0, %c0_1] : memref<16x32xf32, #tpu.memory_space<vmem>>, vector<16x32xf32>
    %c0_2 = arith.constant 0 : index
    %c0_3 = arith.constant 0 : index
    %4 = vector.load %arg3[%c0_2, %c0_3] : memref<16x32xf32, #tpu.memory_space<vmem>>, vector<16x32xf32>
    %c0_4 = arith.constant 0 : index
    %c0_5 = arith.constant 0 : index
    %5 = vector.load %arg4[%c0_4, %c0_5] : memref<32x32xf32, #tpu.memory_space<vmem>>, vector<32x32xf32>
    %cst = arith.constant dense<0.000000e+00> : vector<16x32xf32>
    %6 = tpu.matmul %4, %5, %cst {dimension_numbers = #tpu.dot_dimension_numbers<[1], [0], [0], [1], [0, 0, 1, 1], [], []>} : vector<16x32xf32>, vector<32x32xf32>, vector<16x32xf32> -> vector<16x32xf32>
    %7 = arith.addf %3, %6 : vector<16x32xf32>
    %c0_6 = arith.constant 0 : index
    %c0_7 = arith.constant 0 : index
    %8 = vector.load %arg7[%c0_6, %c0_7] : memref<16x32xf32, #tpu.memory_space<vmem>>, vector<16x32xf32>
    tpu.vector_store %arg7[%c0_6, %c0_7], %7 {strides = array<i32>} : memref<16x32xf32, #tpu.memory_space<vmem>>, vector<16x32xf32>,
    %c0_i32_8 = arith.constant 0 : i32
    %9 = arith.cmpi eq, %arg2, %c0_i32_8 : i32
    %10 = arith.extui %9 : i1 to i32
    %c0_i32_9 = arith.constant 0 : i32
    %11 = arith.cmpi ne, %10, %c0_i32_9 : i32
    scf.if %11 {
      %c0_10 = arith.constant 0 : index
      %c0_11 = arith.constant 0 : index
      %12 = vector.load %arg7[%c0_10, %c0_11] : memref<16x32xf32, #tpu.memory_space<vmem>>, vector<16x32xf32>
      %c0_12 = arith.constant 0 : index
      %c0_13 = arith.constant 0 : index
      %13 = vector.load %arg5[%c0_12, %c0_13] : memref<1x32xf32, #tpu.memory_space<vmem>>, vector<1x32xf32>
      %14 = vector.broadcast %13 : vector<1x32xf32> to vector<16x32xf32>
      %15 = arith.addf %12, %14 : vector<16x32xf32>
      %c0_14 = arith.constant 0 : index
      %c0_15 = arith.constant 0 : index
      %16 = vector.load %arg6[%c0_14, %c0_15] : memref<16x32xf32, #tpu.memory_space<vmem>>, vector<16x32xf32>
      tpu.vector_store %arg6[%c0_14, %c0_15], %15 {strides = array<i32>} : memref<16x32xf32, #tpu.memory_space<vmem>>, vector<16x32xf32>,
    } else {
    }
    return
  }
  func.func @transform_0(%arg0: i32, %arg1: i32, %arg2: i32) -> (i32, i32) {
    %c0_i32 = arith.constant 0 : i32
    return %arg0, %arg2 : i32, i32
  }
  func.func @transform_1(%arg0: i32, %arg1: i32, %arg2: i32) -> (i32, i32) {
    %c0_i32 = arith.constant 0 : i32
    return %arg2, %arg1 : i32, i32
  }
  func.func @transform_2(%arg0: i32, %arg1: i32, %arg2: i32) -> (i32, i32) {
    %c0_i32 = arith.constant 0 : i32
    %c0_i32_0 = arith.constant 0 : i32
    return %c0_i32, %arg1 : i32, i32
  }
  func.func @transform_3(%arg0: i32, %arg1: i32, %arg2: i32) -> (i32, i32) {
    %c0_i32 = arith.constant 0 : i32
    return %arg0, %arg1 : i32, i32
  }
}

</mosaic_0001>

<llo_original>
// kernel: causal_self_attention.7
$region0: #{causal_self_attention.7}
  #allocation0 [shape = 'u32[]', space=smem, size = 0x4, offset = 0x4, fixed_abs, tag = 'smem constant byte address 0x4 - core index']
  #allocation1 [shape = 'u32[144,128]{1,0:T(1,128)}', space=vmem, size = 0x12000, scoped, tag = 'internal scratch']
  #allocation2 [shape = 'f32[16,32]{1,0:T(8,128)}', space=vmem, size = 0x2000, scoped, tag = 'scratch operand']
  %s0 = inlined_call_operand.vmem [shape: f32[16,32], index: 0, kind: input, shape index: {}]
  %s1 = inlined_call_operand.vmem [shape: f32[32,32], index: 1, kind: input, shape index: {}]
  %s2 = inlined_call_operand.vmem [shape: f32[1,32], index: 2, kind: input, shape index: {}]
  %s3 = inlined_call_operand.vmem [shape: f32[16,32], index: 3, kind: output, shape index: {}]
  %s4 = sld [smem:[#allocation0]]
  $region30: #{causal_self_attention.7} parent=0
    _
  %s6 = ssub.s32 1, %s4
  %s7 = scalar_select 0, %s6, %s4
  // Predicated region
  $region2: #{causal_self_attention.7} parent=0 // pred_check
    _
  $region3: #{causal_self_attention.7} parent=0 // pred_check_branch
    %9 = sbr.rel (0) target = $region5
  $region4: #{causal_self_attention.7} parent=0 // pred_region
    _
  $region5: #{causal_self_attention.7} parent=0 // pred_fallthru
    _
  // Predicated region
  $region6: #{causal_self_attention.7} parent=0 // pred_check
    _
  $region7: #{causal_self_attention.7} parent=0 // pred_check_branch
    %11 = sbr.rel (0) target = $region9
  $region8: #{causal_self_attention.7} parent=0 // pred_region
    _
  $region9: #{causal_self_attention.7} parent=0 // pred_fallthru
    _
  // Predicated region
  $region10: #{causal_self_attention.7} parent=0 // pred_check
    _
  $region11: #{causal_self_attention.7} parent=0 // pred_check_branch
    %13 = sbr.rel (0) target = $region13
  $region12: #{causal_self_attention.7} parent=0 // pred_region
    _
  $region13: #{causal_self_attention.7} parent=0 // pred_fallthru
    _
  %p14 = scmp.eq.s32.totalorder 0, 0
  // Predicated region
  $region14: #{causal_self_attention.7} parent=0 // pred_check
    %p15 = pneg %p14
  $region15: #{causal_self_attention.7} parent=0 // pred_check_branch
    %17 = sbr.rel (%p15) target = $region17
  $region16: #{causal_self_attention.7} parent=0 // pred_region
    %vm18 = vcmask 261120
    %19 = vst.msk [vmem:[#allocation2] sm:$0xff] %vm18, 0.0
    %20 = vst.msk [vmem:[#allocation2 + $0x8] sm:$0xff] %vm18, 0.0
  $region17: #{causal_self_attention.7} parent=0 // pred_fallthru
    _
  %v21 = vld [vmem:[#allocation2] sm:$0xff]
  %v22 = vld [vmem:[#allocation2 + $0x8] sm:$0xff]
  %v23 = vld [vmem:[%s0] sm:$0xff]
  %v24 = vld [vmem:[%s0 + $0x8] sm:$0xff]
  %v25 = vld [vmem:[%s1] sm:$0xff]
  %v26 = vld [vmem:[%s1 + $0x8] sm:$0xff]
  %v27 = vld [vmem:[%s1 + $0x10] sm:$0xff]
  %v28 = vld [vmem:[%s1 + $0x18] sm:$0xff]
  %vm29 = vcmask 261120
  %v31 = vsel %vm29, %v23, 0
  %v34 = vsel %vm29, %v24, 0
  %36 = vmatprep.subr.mxu0 0.0
  %37 = vmatpush1.msra.mxu0 %v25
  %38 = vmatprep.subr.mxu0 0.0
  %39 = vmatpush1.msra.mxu0 %v26
  %40 = vmatprep.subr.mxu0 0.0
  %41 = vmatpush1.msra.mxu0 %v27
  %42 = vmatprep.subr.mxu0 0.0
  %43 = vmatpush1.msra.mxu0 %v28
  %44 = vmatprep.subr.mxu0 0.0
  %45 = vmatpush1.msra.mxu0 0.0
  %46 = vmatprep.subr.mxu0 0.0
  %47 = vmatpush1.msra.mxu0 0.0
  %48 = vmatprep.subr.mxu0 0.0
  %49 = vmatpush1.msra.mxu0 0.0
  %50 = vmatprep.subr.mxu0 0.0
  %51 = vmatpush1.msra.mxu0 0.0
  %52 = vmatprep.subr.mxu0 0.0
  %53 = vmatpush1.msra.mxu0 0.0
  %54 = vmatprep.subr.mxu0 0.0
  %55 = vmatpush1.msra.mxu0 0.0
  %56 = vmatprep.subr.mxu0 0.0
  %57 = vmatpush1.msra.mxu0 0.0
  %58 = vmatprep.subr.mxu0 0.0
  %59 = vmatpush1.msra.mxu0 0.0
  %60 = vmatprep.subr.mxu0 0.0
  %61 = vmatpush1.msra.mxu0 0.0
  %62 = vmatprep.subr.mxu0 0.0
  %63 = vmatpush1.msra.mxu0 0.0
  %64 = vmatprep.subr.mxu0 0.0
  %65 = vmatpush1.msra.mxu0 0.0
  %66 = vmatprep.subr.mxu0 0.0
  %67 = vmatpush1.msra.mxu0 0.0
  %68 = vmatprep.subr.mxu0 0.0
  %69 = vmatpush1.msra.mxu0 0.0
  %70 = vmatprep.subr.mxu0 0.0
  %71 = vmatpush1.msra.mxu0 0.0
  %72 = vmatprep.subr.mxu0 0.0
  %73 = vmatpush1.msra.mxu0 0.0
  %74 = vmatprep.subr.mxu0 0.0
  %75 = vmatpush1.msra.mxu0 0.0
  %76 = vmatprep.subr.mxu0 0.0
  %77 = vmatpush1.msra.mxu0 0.0
  %78 = vmatprep.subr.mxu0 0.0
  %79 = vmatpush1.msra.mxu0 0.0
  %80 = vmatprep.subr.mxu0 0.0
  %81 = vmatpush1.msra.mxu0 0.0
  %82 = vmatprep.subr.mxu0 0.0
  %83 = vmatpush1.msra.mxu0 0.0
  %84 = vmatprep.subr.mxu0 0.0
  %85 = vmatpush1.msra.mxu0 0.0
  %86 = vmatprep.subr.mxu0 0.0
  %87 = vmatpush1.msra.mxu0 0.0
  %88 = vmatprep.subr.mxu0 0.0
  %89 = vmatpush1.msra.mxu0 0.0
  %90 = vmatprep.subr.mxu0 0.0
  %91 = vmatpush1.msra.mxu0 0.0
  %92 = vmatprep.subr.mxu0 0.0
  %93 = vmatpush1.msra.mxu0 0.0
  %94 = vmatprep.subr.mxu0 0.0
  %95 = vmatpush1.msra.mxu0 0.0
  %96 = vmatprep.subr.mxu0 0.0
  %97 = vmatpush1.msra.mxu0 0.0
  %98 = vmatprep.subr.mxu0 0.0
  %99 = vmatpush1.msra.mxu0 0.0
  %100 = vmatprep.mubr.f32.mxu0 0.0
  %101 = vmatmul.mubr.f32.gmra.mrb[0].mxu0 %v31
  %v102 = vpop.f32.mrb[0].mxu0
  %v103 = vadd.f32 0.0, %v102
  %v104 = vpop.f32.mrb[0].mxu0
  %105 = vmatprep.mubr.f32.mxu0 0.0
  %106 = vmatmul.mubr.f32.gmra.mrb[0].mxu0 %v34
  %v107 = vpop.f32.mrb[0].mxu0
  %v108 = vadd.f32 0.0, %v107
  %v109 = vpop.f32.mrb[0].mxu0
  %110 = vdwg.mxu0
  %v111 = vadd.f32 %v21, %v103
  %v112 = vadd.f32 %v22, %v108
  %113 = vst.msk [vmem:[#allocation2] sm:$0xff] %vm29, %v111
  %114 = vst.msk [vmem:[#allocation2 + $0x8] sm:$0xff] %vm29, %v112
  // Predicated region
  $region18: #{causal_self_attention.7} parent=0 // pred_check
    %p115 = pneg %p14
  $region19: #{causal_self_attention.7} parent=0 // pred_check_branch
    %117 = sbr.rel (%p115) target = $region21
  $region20: #{causal_self_attention.7} parent=0 // pred_region
    %v118 = vld [vmem:[#allocation2] sm:$0xff]
    %v119 = vld [vmem:[#allocation2 + $0x8] sm:$0xff]
    %v120 = vld [vmem:[%s2] sm:$0x1]
    %v122 = vlaneseq
    %v123 = vshrl.u32 %v122, 7
    %v124 = vsub.s32 0, %v123
    %v125 = vrot.slane %v120, %v124
    %v127 = vadd.f32 %v118, %v125
    %v128 = vadd.f32 %v119, %v125
    %129 = vst.msk [vmem:[%s3] sm:$0xff] %vm29, %v127
    %130 = vst.msk [vmem:[%s3 + $0x8] sm:$0xff] %vm29, %v128
  $region21: #{causal_self_attention.7} parent=0 // pred_fallthru
    _
  // Predicated region
  $region22: #{causal_self_attention.7} parent=0 // pred_check
    _
  $region23: #{causal_self_attention.7} parent=0 // pred_check_branch
    %132 = sbr.rel (0) target = $region25
  $region24: #{causal_self_attention.7} parent=0 // pred_region
    _
  $region25: #{causal_self_attention.7} parent=0 // pred_fallthru
    _
  // Predicated region
  $region26: #{causal_self_attention.7} parent=0 // pred_check
    _
  $region27: #{causal_self_attention.7} parent=0 // pred_check_branch
    %134 = sbr.rel (0) target = $region29
  $region28: #{causal_self_attention.7} parent=0 // pred_region
    _
  $region29: #{causal_self_attention.7} parent=0 // pred_fallthru
    _

// kernel: causal_self_attention.9
$region0: #{causal_self_attention.9}
  #allocation0 [shape = 'u32[]', space=smem, size = 0x4, offset = 0x4, fixed_abs, tag = 'smem constant byte address 0x4 - core index']
  #allocation1 [shape = 'u32[144,128]{1,0:T(1,128)}', space=vmem, size = 0x12000, scoped, tag = 'internal scratch']
  #allocation2 [shape = 'f32[16,32]{1,0:T(8,128)}', space=vmem, size = 0x2000, scoped, tag = 'scratch operand']
  %s0 = inlined_call_operand.vmem [shape: f32[16,32], index: 0, kind: input, shape index: {}]
  %s1 = inlined_call_operand.vmem [shape: f32[32,32], index: 1, kind: input, shape index: {}]
  %s2 = inlined_call_operand.vmem [shape: f32[1,32], index: 2, kind: input, shape index: {}]
  %s3 = inlined_call_operand.hbm [shape: f32[16,32], index: 3, kind: output, shape index: {}]
  %s4 = sld [smem:[#allocation0]]
  $region30: #{causal_self_attention.9} parent=0
    _
  %s6 = ssub.s32 1, %s4
  %s7 = scalar_select 0, %s6, %s4
  $region1: #{causal_self_attention.9} parent=0
    #allocation3 [shape = 'u8[8192]{0}', space=vmem, size = 0x2000, scoped, tag = 'output window, operand 0, single buffered']
    #allocation4 [shape = 's32[1]{0}', space=sflag, size = 0x4, scoped, tag = 'scoped memory for causal_self_attention.9']
    %8 = vsyncpa [#allocation4], 0
    // Predicated region
    $region2: #{causal_self_attention.9} parent=1 // pred_check
      _
    $region3: #{causal_self_attention.9} parent=1 // pred_check_branch
      %10 = sbr.rel (0) target = $region5
    $region4: #{causal_self_attention.9} parent=1 // pred_region
      _
    $region5: #{causal_self_attention.9} parent=1 // pred_fallthru
      _
    // Predicated region
    $region6: #{causal_self_attention.9} parent=1 // pred_check
      _
    $region7: #{causal_self_attention.9} parent=1 // pred_check_branch
      %12 = sbr.rel (0) target = $region9
    $region8: #{causal_self_attention.9} parent=1 // pred_region
      _
    $region9: #{causal_self_attention.9} parent=1 // pred_fallthru
      _
    // Predicated region
    $region10: #{causal_self_attention.9} parent=1 // pred_check
      _
    $region11: #{causal_self_attention.9} parent=1 // pred_check_branch
      %14 = sbr.rel (0) target = $region13
    $region12: #{causal_self_attention.9} parent=1 // pred_region
      _
    $region13: #{causal_self_attention.9} parent=1 // pred_fallthru
      _
    %p15 = scmp.eq.s32.totalorder 0, 0
    // Predicated region
    $region14: #{causal_self_attention.9} parent=1 // pred_check
      %p16 = pneg %p15
    $region15: #{causal_self_attention.9} parent=1 // pred_check_branch
      %18 = sbr.rel (%p16) target = $region17
    $region16: #{causal_self_attention.9} parent=1 // pred_region
      %vm19 = vcmask 261120
      %20 = vst.msk [vmem:[#allocation2] sm:$0xff] %vm19, 0.0
      %21 = vst.msk [vmem:[#allocation2 + $0x8] sm:$0xff] %vm19, 0.0
    $region17: #{causal_self_attention.9} parent=1 // pred_fallthru
      _
    %v22 = vld [vmem:[#allocation2] sm:$0xff]
    %v23 = vld [vmem:[#allocation2 + $0x8] sm:$0xff]
    %v24 = vld [vmem:[%s0] sm:$0xff]
    %v25 = vld [vmem:[%s0 + $0x8] sm:$0xff]
    %v26 = vld [vmem:[%s1] sm:$0xff]
    %v27 = vld [vmem:[%s1 + $0x8] sm:$0xff]
    %v28 = vld [vmem:[%s1 + $0x10] sm:$0xff]
    %v29 = vld [vmem:[%s1 + $0x18] sm:$0xff]
    %vm30 = vcmask 261120
    %v32 = vsel %vm30, %v24, 0
    %v35 = vsel %vm30, %v25, 0
    %37 = vmatprep.subr.mxu0 0.0
    %38 = vmatpush1.msra.mxu0 %v26
    %39 = vmatprep.subr.mxu0 0.0
    %40 = vmatpush1.msra.mxu0 %v27
    %41 = vmatprep.subr.mxu0 0.0
    %42 = vmatpush1.msra.mxu0 %v28
    %43 = vmatprep.subr.mxu0 0.0
    %44 = vmatpush1.msra.mxu0 %v29
    %45 = vmatprep.subr.mxu0 0.0
    %46 = vmatpush1.msra.mxu0 0.0
    %47 = vmatprep.subr.mxu0 0.0
    %48 = vmatpush1.msra.mxu0 0.0
    %49 = vmatprep.subr.mxu0 0.0
    %50 = vmatpush1.msra.mxu0 0.0
    %51 = vmatprep.subr.mxu0 0.0
    %52 = vmatpush1.msra.mxu0 0.0
    %53 = vmatprep.subr.mxu0 0.0
    %54 = vmatpush1.msra.mxu0 0.0
    %55 = vmatprep.subr.mxu0 0.0
    %56 = vmatpush1.msra.mxu0 0.0
    %57 = vmatprep.subr.mxu0 0.0
    %58 = vmatpush1.msra.mxu0 0.0
    %59 = vmatprep.subr.mxu0 0.0
    %60 = vmatpush1.msra.mxu0 0.0
    %61 = vmatprep.subr.mxu0 0.0
    %62 = vmatpush1.msra.mxu0 0.0
    %63 = vmatprep.subr.mxu0 0.0
    %64 = vmatpush1.msra.mxu0 0.0
    %65 = vmatprep.subr.mxu0 0.0
    %66 = vmatpush1.msra.mxu0 0.0
    %67 = vmatprep.subr.mxu0 0.0
    %68 = vmatpush1.msra.mxu0 0.0
    %69 = vmatprep.subr.mxu0 0.0
    %70 = vmatpush1.msra.mxu0 0.0
    %71 = vmatprep.subr.mxu0 0.0
    %72 = vmatpush1.msra.mxu0 0.0
    %73 = vmatprep.subr.mxu0 0.0
    %74 = vmatpush1.msra.mxu0 0.0
    %75 = vmatprep.subr.mxu0 0.0
    %76 = vmatpush1.msra.mxu0 0.0
    %77 = vmatprep.subr.mxu0 0.0
    %78 = vmatpush1.msra.mxu0 0.0
    %79 = vmatprep.subr.mxu0 0.0
    %80 = vmatpush1.msra.mxu0 0.0
    %81 = vmatprep.subr.mxu0 0.0
    %82 = vmatpush1.msra.mxu0 0.0
    %83 = vmatprep.subr.mxu0 0.0
    %84 = vmatpush1.msra.mxu0 0.0
    %85 = vmatprep.subr.mxu0 0.0
    %86 = vmatpush1.msra.mxu0 0.0
    %87 = vmatprep.subr.mxu0 0.0
    %88 = vmatpush1.msra.mxu0 0.0
    %89 = vmatprep.subr.mxu0 0.0
    %90 = vmatpush1.msra.mxu0 0.0
    %91 = vmatprep.subr.mxu0 0.0
    %92 = vmatpush1.msra.mxu0 0.0
    %93 = vmatprep.subr.mxu0 0.0
    %94 = vmatpush1.msra.mxu0 0.0
    %95 = vmatprep.subr.mxu0 0.0
    %96 = vmatpush1.msra.mxu0 0.0
    %97 = vmatprep.subr.mxu0 0.0
    %98 = vmatpush1.msra.mxu0 0.0
    %99 = vmatprep.subr.mxu0 0.0
    %100 = vmatpush1.msra.mxu0 0.0
    %101 = vmatprep.mubr.f32.mxu0 0.0
    %102 = vmatmul.mubr.f32.gmra.mrb[0].mxu0 %v32
    %v103 = vpop.f32.mrb[0].mxu0
    %v104 = vadd.f32 0.0, %v103
    %v105 = vpop.f32.mrb[0].mxu0
    %106 = vmatprep.mubr.f32.mxu0 0.0
    %107 = vmatmul.mubr.f32.gmra.mrb[0].mxu0 %v35
    %v108 = vpop.f32.mrb[0].mxu0
    %v109 = vadd.f32 0.0, %v108
    %v110 = vpop.f32.mrb[0].mxu0
    %111 = vdwg.mxu0
    %v112 = vadd.f32 %v22, %v104
    %v113 = vadd.f32 %v23, %v109
    %114 = vst.msk [vmem:[#allocation2] sm:$0xff] %vm30, %v112
    %115 = vst.msk [vmem:[#allocation2 + $0x8] sm:$0xff] %vm30, %v113
    // Predicated region
    $region18: #{causal_self_attention.9} parent=1 // pred_check
      %p116 = pneg %p15
    $region19: #{causal_self_attention.9} parent=1 // pred_check_branch
      %118 = sbr.rel (%p116) target = $region21
    $region20: #{causal_self_attention.9} parent=1 // pred_region
      %v119 = vld [vmem:[#allocation2] sm:$0xff]
      %v120 = vld [vmem:[#allocation2 + $0x8] sm:$0xff]
      %v121 = vld [vmem:[%s2] sm:$0x1]
      %v123 = vlaneseq
      %v124 = vshrl.u32 %v123, 7
      %v125 = vsub.s32 0, %v124
      %v126 = vrot.slane %v121, %v125
      %v128 = vadd.f32 %v119, %v126
      %v129 = vadd.f32 %v120, %v126
      %130 = vst.msk [vmem:[#allocation3] sm:$0xff] %vm30, %v128
      %131 = vst.msk [vmem:[#allocation3 + $0x8] sm:$0xff] %vm30, %v129
    $region21: #{causal_self_attention.9} parent=1 // pred_fallthru
      _
    // Predicated region
    $region22: #{causal_self_attention.9} parent=1 // pred_check
      _
    $region23: #{causal_self_attention.9} parent=1 // pred_check_branch
      %133 = sbr.rel (0) target = $region25
    $region24: #{causal_self_attention.9} parent=1 // pred_region
      %s135 = ssub.s32 256, 256
      %136 = vsyncadd [#allocation4], %s135
      %s137 = sshll.u32 [#allocation3], 4
      %s138 = int_to_ptr.vmem [resolvable:$true] %s137
      %143 = dma.vmem_to_hbm [thread:$0]  %s138, 256, %s3, [#allocation4], 128, 128, 8
    $region25: #{causal_self_attention.9} parent=1 // pred_fallthru
      _
    // Predicated region
    $region26: #{causal_self_attention.9} parent=1 // pred_check
      _
    $region27: #{causal_self_attention.9} parent=1 // pred_check_branch
      %145 = sbr.rel (0) target = $region29
    $region28: #{causal_self_attention.9} parent=1 // pred_region
      %146 = dma.done [#allocation4], 256
    $region29: #{causal_self_attention.9} parent=1 // pred_fallthru
      _
    %147 = vsyncpa [#allocation4], 1

// kernel: causal_self_attention.8
$region0: #{causal_self_attention.8}
  #allocation0 [shape = 'u32[]', space=smem, size = 0x4, offset = 0x4, fixed_abs, tag = 'smem constant byte address 0x4 - core index']
  #allocation1 [shape = 'u32[144,128]{1,0:T(1,128)}', space=vmem, size = 0x12000, scoped, tag = 'internal scratch']
  #allocation2 [shape = 'f32[4,8,1]{2,1,0:T(8,128)}', space=vmem, size = 0x4000, scoped, tag = 'scratch operand']
  #allocation3 [shape = 'f32[4,8,1]{2,1,0:T(8,128)}', space=vmem, size = 0x4000, scoped, tag = 'scratch operand']
  #allocation4 [shape = 'f32[4,8,8]{2,1,0:T(8,128)}', space=vmem, size = 0x4000, scoped, tag = 'scratch operand']
  %s0 = inlined_call_operand.vmem [shape: f32[2,8,32], index: 0, kind: input, shape index: {}]
  %s1 = inlined_call_operand.vmem [shape: f32[2,8,32], index: 1, kind: input, shape index: {}]
  %s2 = inlined_call_operand.vmem [shape: f32[2,8,32], index: 2, kind: input, shape index: {}]
  %s3 = inlined_call_operand.vmem [shape: f32[2,8,32], index: 3, kind: output, shape index: {}]
  %s4 = sld [smem:[#allocation0]]
  $region57: #{causal_self_attention.8} parent=0
    _
  %s6 = ssub.s32 1, %s4
  %s7 = scalar_select 0, %s6, %s4
  loop: start=0, step=1, limit=4
  $region2: #{causal_self_attention.8} parent=0 // loop_pre_header
    _
  $region3: #{causal_self_attention.8} parent=0 // loop_header
    %s9 = sphi 0, %s13
    %p10 = scmp.ge.s32.totalorder %s9, 4
    %s16 = sphi 0, %s35
    %s17 = sphi 0, %s31
    %s18 = sphi 0, %s27
    %s19 = sphi 0, %s16
    %s20 = sphi 0, %s17
    %s21 = sphi 0, %s18
    %s22 = sphi 0, %s19
    %s23 = sphi 0, %s20
    %s24 = sphi 0, %s21
    %s40 = sphi 0, %s42
    %s43 = sphi 0, %s40
    %s44 = sphi 0, %s43
    %s60 = sphi 0, %s44
    %s72 = sphi 0, %s74
    %s75 = sphi 0, %s72
    %s76 = sphi 0, %s75
    %s92 = sphi 0, %s76
    %s104 = sphi 0, %s106
    %s107 = sphi 0, %s104
    %s108 = sphi 0, %s107
    %s124 = sphi 0, %s108
    %s132 = sphi 0, %s134
    %s135 = sphi 0, %s132
    %s136 = sphi 0, %s135
    %s152 = sphi 0, %s136
  $region4: #{causal_self_attention.8} parent=0 // loop_header_branch
    %12 = sbr.rel (%p10) target = $region8
  $region5: #{causal_self_attention.8} parent=0 // loop_body
    %s14 = ssub.s32 %s9, 1
    %s15 = ssub.s32 %s9, 2
    %s25 = sadd.s32 1, %s18
    %p26 = scmp.ge.s32.totalorder %s25, 1
    %s27 = scalar_select %p26, 0, %s25
    %s28 = sadd.s32 1, %s17
    %s29 = scalar_select %p26, %s28, %s17
    %p30 = scmp.ge.s32.totalorder %s29, 1
    %s31 = scalar_select %p30, 0, %s29
    %s32 = sadd.s32 1, %s16
    %s33 = scalar_select %p30, %s32, %s16
    %p34 = scmp.ge.s32.totalorder %s33, 2
    %s35 = scalar_select %p34, 0, %s33
    %s36 = ssub.s32 %s16, %s35
    %s37 = ssub.s32 %s17, %s31
    %s38 = sor.u32 %s36, %s37
    %p39 = scmp.eq.s32.totalorder %s38, 0
    %s41 = sadd.s32 %s40, 1
    %s42 = scalar_select %p39, %s40, %s41
    %p45 = pneg %p39
    %p46 = scmp.eq.s32.totalorder %s9, 1
    %p47 = por %p45, %p46
    %p48 = scmp.ne.s32.totalorder %s40, %s43
    %p49 = scmp.eq.s32.totalorder %s9, 0
    %p50 = por %p48, %p49
    %p51 = scmp.ne.s32.totalorder %s40, %s43
    %p52 = scmp.eq.s32.totalorder %s14, 1
    %p53 = por %p51, %p52
    %p54 = scmp.ne.s32.totalorder %s43, %s44
    %p55 = scmp.eq.s32.totalorder %s14, 0
    %p56 = por %p54, %p55
    %p57 = scmp.ne.s32.totalorder %s43, %s44
    %p58 = scmp.eq.s32.totalorder %s15, 1
    %p59 = por %p57, %p58
    %p61 = scmp.ne.s32.totalorder %s44, %s60
    %p62 = scmp.eq.s32.totalorder %s15, 0
    %p63 = por %p61, %p62
    %p64 = scmp.lt.s32.totalorder %s18, %s17
    %s65 = scalar_select %p64, %s18, %s17
    %p66 = scmp.lt.s32.totalorder %s27, %s31
    %s67 = scalar_select %p66, %s27, %s31
    %s68 = ssub.s32 %s16, %s35
    %s69 = ssub.s32 %s65, %s67
    %s70 = sor.u32 %s68, %s69
    %p71 = scmp.eq.s32.totalorder %s70, 0
    %s73 = sadd.s32 %s72, 1
    %s74 = scalar_select %p71, %s72, %s73
    %p77 = pneg %p71
    %p78 = scmp.eq.s32.totalorder %s9, 1
    %p79 = por %p77, %p78
    %p80 = scmp.ne.s32.totalorder %s72, %s75
    %p81 = scmp.eq.s32.totalorder %s9, 0
    %p82 = por %p80, %p81
    %p83 = scmp.ne.s32.totalorder %s72, %s75
    %p84 = scmp.eq.s32.totalorder %s14, 1
    %p85 = por %p83, %p84
    %p86 = scmp.ne.s32.totalorder %s75, %s76
    %p87 = scmp.eq.s32.totalorder %s14, 0
    %p88 = por %p86, %p87
    %p89 = scmp.ne.s32.totalorder %s75, %s76
    %p90 = scmp.eq.s32.totalorder %s15, 1
    %p91 = por %p89, %p90
    %p93 = scmp.ne.s32.totalorder %s76, %s92
    %p94 = scmp.eq.s32.totalorder %s15, 0
    %p95 = por %p93, %p94
    %p96 = scmp.lt.s32.totalorder %s18, %s17
    %s97 = scalar_select %p96, %s18, %s17
    %p98 = scmp.lt.s32.totalorder %s27, %s31
    %s99 = scalar_select %p98, %s27, %s31
    %s100 = ssub.s32 %s16, %s35
    %s101 = ssub.s32 %s97, %s99
    %s102 = sor.u32 %s100, %s101
    %p103 = scmp.eq.s32.totalorder %s102, 0
    %s105 = sadd.s32 %s104, 1
    %s106 = scalar_select %p103, %s104, %s105
    %p109 = pneg %p103
    %p110 = scmp.eq.s32.totalorder %s9, 1
    %p111 = por %p109, %p110
    %p112 = scmp.ne.s32.totalorder %s104, %s107
    %p113 = scmp.eq.s32.totalorder %s9, 0
    %p114 = por %p112, %p113
    %p115 = scmp.ne.s32.totalorder %s104, %s107
    %p116 = scmp.eq.s32.totalorder %s14, 1
    %p117 = por %p115, %p116
    %p118 = scmp.ne.s32.totalorder %s107, %s108
    %p119 = scmp.eq.s32.totalorder %s14, 0
    %p120 = por %p118, %p119
    %p121 = scmp.ne.s32.totalorder %s107, %s108
    %p122 = scmp.eq.s32.totalorder %s15, 1
    %p123 = por %p121, %p122
    %p125 = scmp.ne.s32.totalorder %s108, %s124
    %p126 = scmp.eq.s32.totalorder %s15, 0
    %p127 = por %p125, %p126
    %s128 = ssub.s32 %s16, %s35
    %s129 = ssub.s32 %s17, %s31
    %s130 = sor.u32 %s128, %s129
    %p131 = scmp.eq.s32.totalorder %s130, 0
    %s133 = sadd.s32 %s132, 1
    %s134 = scalar_select %p131, %s132, %s133
    %p137 = pneg %p131
    %p138 = scmp.eq.s32.totalorder %s9, 1
    %p139 = por %p137, %p138
    %p140 = scmp.ne.s32.totalorder %s132, %s135
    %p141 = scmp.eq.s32.totalorder %s9, 0
    %p142 = por %p140, %p141
    %p143 = scmp.ne.s32.totalorder %s132, %s135
    %p144 = scmp.eq.s32.totalorder %s14, 1
    %p145 = por %p143, %p144
    %p146 = scmp.ne.s32.totalorder %s135, %s136
    %p147 = scmp.eq.s32.totalorder %s14, 0
    %p148 = por %p146, %p147
    %p149 = scmp.ne.s32.totalorder %s135, %s136
    %p150 = scmp.eq.s32.totalorder %s15, 1
    %p151 = por %p149, %p150
    %p153 = scmp.ne.s32.totalorder %s136, %s152
    %p154 = scmp.eq.s32.totalorder %s15, 0
    %p155 = por %p153, %p154
    %p156 = scmp.le.s32.totalorder 1, %s9
    %p157 = scmp.lt.s32.totalorder %s9, 3
    %p158 = pnand %p156, %p157
    %p159 = pneg %p158
    // Predicated region
    $region9: #{causal_self_attention.8} parent=5 // pred_check
      _
    $region10: #{causal_self_attention.8} parent=5 // pred_check_branch
      %161 = sbr.rel (%p158) target = $region12
    $region11: #{causal_self_attention.8} parent=5 // pred_region
      %s162 = ssub.s32 %s9, 1
    $region12: #{causal_self_attention.8} parent=5 // pred_fallthru
      _
    %p163 = scmp.lt.s32.totalorder %s9, 2
    // Predicated region
    $region13: #{causal_self_attention.8} parent=5 // pred_check
      %p164 = pneg %p163
    $region14: #{causal_self_attention.8} parent=5 // pred_check_branch
      %166 = sbr.rel (%p164) target = $region16
    $region15: #{causal_self_attention.8} parent=5 // pred_region
      // Predicated region
      $region17: #{causal_self_attention.8} parent=15 // pred_check
        %p167 = pneg %p50
      $region18: #{causal_self_attention.8} parent=15 // pred_check_branch
        %169 = sbr.rel (%p167) target = $region20
      $region19: #{causal_self_attention.8} parent=15 // pred_region
        %p170 = scmp.lt.s32.totalorder %s16, 1
        %s171 = scalar_select %p170, %s16, 1
        %p172 = scmp.lt.s32.totalorder %s17, 0
        %s173 = scalar_select %p172, %s17, 0
        %s174 = sadd.s32 %s173, %s171
        %s175 = smul.addr %s174, 8
        %s176 = scalar_lea.vmem %s0, %s175
      $region20: #{causal_self_attention.8} parent=15 // pred_fallthru
        _
      // Predicated region
      $region21: #{causal_self_attention.8} parent=15 // pred_check
        %p177 = pneg %p82
      $region22: #{causal_self_attention.8} parent=15 // pred_check_branch
        %179 = sbr.rel (%p177) target = $region24
      $region23: #{causal_self_attention.8} parent=15 // pred_region
        %p180 = scmp.lt.s32.totalorder %s18, %s17
        %s181 = scalar_select %p180, %s18, %s17
        %p182 = scmp.lt.s32.totalorder %s16, 1
        %s183 = scalar_select %p182, %s16, 1
        %p184 = scmp.lt.s32.totalorder %s181, 0
        %s185 = scalar_select %p184, %s181, 0
        %s186 = sadd.s32 %s185, %s183
        %s187 = smul.addr %s186, 8
        %s188 = scalar_lea.vmem %s1, %s187
        %p189 = scmp.lt.s32.totalorder %s18, %s17
        %s190 = scalar_select %p189, %s18, %s17
      $region24: #{causal_self_attention.8} parent=15 // pred_fallthru
        _
      // Predicated region
      $region25: #{causal_self_attention.8} parent=15 // pred_check
        %p191 = pneg %p114
      $region26: #{causal_self_attention.8} parent=15 // pred_check_branch
        %193 = sbr.rel (%p191) target = $region28
      $region27: #{causal_self_attention.8} parent=15 // pred_region
        %p194 = scmp.lt.s32.totalorder %s18, %s17
        %s195 = scalar_select %p194, %s18, %s17
        %p196 = scmp.lt.s32.totalorder %s16, 1
        %s197 = scalar_select %p196, %s16, 1
        %p198 = scmp.lt.s32.totalorder %s195, 0
        %s199 = scalar_select %p198, %s195, 0
        %s200 = sadd.s32 %s199, %s197
        %s201 = smul.addr %s200, 8
        %s202 = scalar_lea.vmem %s2, %s201
        %p203 = scmp.lt.s32.totalorder %s18, %s17
        %s204 = scalar_select %p203, %s18, %s17
      $region28: #{causal_self_attention.8} parent=15 // pred_fallthru
        _
    $region16: #{causal_self_attention.8} parent=5 // pred_fallthru
      _
    %p205 = scmp.le.s32.totalorder 1, %s9
    %p206 = scmp.lt.s32.totalorder %s9, 3
    %p207 = pnand %p205, %p206
    %p208 = pneg %p207
    // Predicated region
    $region29: #{causal_self_attention.8} parent=5 // pred_check
      _
    $region30: #{causal_self_attention.8} parent=5 // pred_check_branch
      %210 = sbr.rel (%p207) target = $region32
    $region31: #{causal_self_attention.8} parent=5 // pred_region
      %s211 = ssub.s32 %s9, 1
      %p212 = scmp.lt.s32.totalorder %s19, 1
      %s213 = scalar_select %p212, %s19, 1
      %p214 = scmp.lt.s32.totalorder %s20, 0
      %s215 = scalar_select %p214, %s20, 0
      %s216 = sadd.s32 %s215, %s213
      %s217 = smul.addr %s216, 8
      %s218 = scalar_lea.vmem %s0, %s217
      %p219 = pneg %p56
      %p220 = pneg %p53
      %p221 = scmp.lt.s32.totalorder %s21, %s20
      %s222 = scalar_select %p221, %s21, %s20
      %p223 = scmp.lt.s32.totalorder %s19, 1
      %s224 = scalar_select %p223, %s19, 1
      %p225 = scmp.lt.s32.totalorder %s222, 0
      %s226 = scalar_select %p225, %s222, 0
      %s227 = sadd.s32 %s226, %s224
      %s228 = smul.addr %s227, 8
      %s229 = scalar_lea.vmem %s1, %s228
      %p230 = pneg %p88
      %p231 = pneg %p85
      %p232 = scmp.lt.s32.totalorder %s21, %s20
      %s233 = scalar_select %p232, %s21, %s20
      %p234 = scmp.lt.s32.totalorder %s19, 1
      %s235 = scalar_select %p234, %s19, 1
      %p236 = scmp.lt.s32.totalorder %s233, 0
      %s237 = scalar_select %p236, %s233, 0
      %s238 = sadd.s32 %s237, %s235
      %s239 = smul.addr %s238, 8
      %s240 = scalar_lea.vmem %s2, %s239
      %p241 = pneg %p120
      %p242 = pneg %p117
      %p243 = pneg %p148
      %p244 = pneg %p145
      %p245 = scmp.lt.s32.totalorder %s19, 1
      %s246 = scalar_select %p245, %s19, 1
      %p247 = scmp.lt.s32.totalorder %s20, 0
      %s248 = scalar_select %p247, %s20, 0
      %s249 = sadd.s32 %s248, %s246
      %s250 = smul.addr %s249, 8
      %s251 = scalar_lea.vmem %s3, %s250
      %p252 = scmp.lt.s32.totalorder %s19, 1
      %s253 = scalar_select %p252, %s19, 1
      %p254 = scmp.lt.s32.totalorder %s20, 0
      %s255 = scalar_select %p254, %s20, 0
      %s256 = sadd.s32 %s255, %s253
      %s257 = smul.addr %s256, 8
      %s258 = scalar_lea.vmem %s0, %s257
      %p259 = scmp.lt.s32.totalorder %s21, %s20
      %s260 = scalar_select %p259, %s21, %s20
      %p261 = scmp.lt.s32.totalorder %s19, 1
      %s262 = scalar_select %p261, %s19, 1
      %p263 = scmp.lt.s32.totalorder %s260, 0
      %s264 = scalar_select %p263, %s260, 0
      %s265 = sadd.s32 %s264, %s262
      %s266 = smul.addr %s265, 8
      %s267 = scalar_lea.vmem %s1, %s266
      %p268 = scmp.lt.s32.totalorder %s21, %s20
      %s269 = scalar_select %p268, %s21, %s20
      %p270 = scmp.lt.s32.totalorder %s21, %s20
      %s271 = scalar_select %p270, %s21, %s20
      %p272 = scmp.lt.s32.totalorder %s19, 1
      %s273 = scalar_select %p272, %s19, 1
      %p274 = scmp.lt.s32.totalorder %s271, 0
      %s275 = scalar_select %p274, %s271, 0
      %s276 = sadd.s32 %s275, %s273
      %s277 = smul.addr %s276, 8
      %s278 = scalar_lea.vmem %s2, %s277
      %p279 = scmp.lt.s32.totalorder %s21, %s20
      %s280 = scalar_select %p279, %s21, %s20
      %p281 = scmp.lt.s32.totalorder %s19, 1
      %s282 = scalar_select %p281, %s19, 1
      %p283 = scmp.lt.s32.totalorder %s20, 0
      %s284 = scalar_select %p283, %s20, 0
      %s285 = sadd.s32 %s284, %s282
      %s286 = smul.addr %s285, 8
      %s287 = scalar_lea.vmem %s3, %s286
      %p288 = scmp.eq.s32.totalorder %s21, 0
      // Predicated region
      $region33: #{causal_self_attention.8} parent=31 // pred_check
        %p289 = pneg %p288
      $region34: #{causal_self_attention.8} parent=31 // pred_check_branch
        %291 = sbr.rel (%p289) target = $region36
      $region35: #{causal_self_attention.8} parent=31 // pred_region
        %vm292 = vcmask 7168
        %293 = vst.msk [vmem:[#allocation2] sm:$0xff] %vm292, -inf
        %294 = vst.msk [vmem:[#allocation2 + $0x8] sm:$0xff] %vm292, -inf
        %295 = vst.msk [vmem:[#allocation2 + $0x10] sm:$0xff] %vm292, -inf
        %296 = vst.msk [vmem:[#allocation2 + $0x18] sm:$0xff] %vm292, -inf
        %297 = vst.msk [vmem:[#allocation3] sm:$0xff] %vm292, 0.0
        %298 = vst.msk [vmem:[#allocation3 + $0x8] sm:$0xff] %vm292, 0.0
        %299 = vst.msk [vmem:[#allocation3 + $0x10] sm:$0xff] %vm292, 0.0
        %300 = vst.msk [vmem:[#allocation3 + $0x18] sm:$0xff] %vm292, 0.0
        %vm301 = vcmask 64512
        %302 = vst.msk [vmem:[#allocation4] sm:$0xff] %vm301, 0.0
        %303 = vst.msk [vmem:[#allocation4 + $0x8] sm:$0xff] %vm301, 0.0
        %304 = vst.msk [vmem:[#allocation4 + $0x10] sm:$0xff] %vm301, 0.0
        %305 = vst.msk [vmem:[#allocation4 + $0x18] sm:$0xff] %vm301, 0.0
      $region36: #{causal_self_attention.8} parent=31 // pred_fallthru
        _
      %s306 = smul.u32 %s21, 8
      %s307 = smul.u32 %s20, 8
      %s308 = sadd.s32 %s307, 7
      %p309 = scmp.le.s32.totalorder %s306, %s308
      // Predicated region
      $region37: #{causal_self_attention.8} parent=31 // pred_check
        %p310 = pneg %p309
      $region38: #{causal_self_attention.8} parent=31 // pred_check_branch
        %312 = sbr.rel (%p310) target = $region40
      $region39: #{causal_self_attention.8} parent=31 // pred_region
        %v313 = vld [vmem:[%s258] sm:$0xff]
        %v314 = vmul.f32 %v313, 0.35355338
        %v315 = vld [vmem:[%s267] sm:$0xff]
        %v316 = vld [vmem:[%s278] sm:$0xff]
        %v317 = vlaneseq
        %v318 = vshrl.u32 %v317, 7
        %v319 = vstv %s307
        %v320 = vadd.s32 %v319, %v318
        %v321 = vlaneseq
        %v322 = vand.u32 %v321, 127
        %v323 = vstv %s306
        %v324 = vadd.s32 %v323, %v322
        %vm325 = vcmp.ge.s32.totalorder %v320, %v324
        %vm326 = vcmask 64512
        %v328 = vsel %vm326, %v314, 0
        %v331 = vsel %vm326, %v315, 0
        %333 = vmatprep.subr.mxu0 0.0
        %334 = vmatpush1.xpose.msra.mxu0 %v331
        %335 = vmatprep.subr.mxu0 0.0
        %336 = vmatpush1.xpose.msra.mxu0 0.0
        %337 = vmatprep.subr.mxu0 0.0
        %338 = vmatpush1.xpose.msra.mxu0 0.0
        %339 = vmatprep.subr.mxu0 0.0
        %340 = vmatpush1.xpose.msra.mxu0 0.0
        %341 = vmatprep.subr.mxu0 0.0
        %342 = vmatpush1.xpose.msra.mxu0 0.0
        %343 = vmatprep.subr.mxu0 0.0
        %344 = vmatpush1.xpose.msra.mxu0 0.0
        %345 = vmatprep.subr.mxu0 0.0
        %346 = vmatpush1.xpose.msra.mxu0 0.0
        %347 = vmatprep.subr.mxu0 0.0
        %348 = vmatpush1.xpose.msra.mxu0 0.0
        %349 = vmatprep.subr.mxu0 0.0
        %350 = vmatpush1.xpose.msra.mxu0 0.0
        %351 = vmatprep.subr.mxu0 0.0
        %352 = vmatpush1.xpose.msra.mxu0 0.0
        %353 = vmatprep.subr.mxu0 0.0
        %354 = vmatpush1.xpose.msra.mxu0 0.0
        %355 = vmatprep.subr.mxu0 0.0
        %356 = vmatpush1.xpose.msra.mxu0 0.0
        %357 = vmatprep.subr.mxu0 0.0
        %358 = vmatpush1.xpose.msra.mxu0 0.0
        %359 = vmatprep.subr.mxu0 0.0
        %360 = vmatpush1.xpose.msra.mxu0 0.0
        %361 = vmatprep.subr.mxu0 0.0
        %362 = vmatpush1.xpose.msra.mxu0 0.0
        %363 = vmatprep.subr.mxu0 0.0
        %364 = vmatpush1.xpose.msra.mxu0 0.0
        %365 = vmatprep.subr.mxu0 0.0
        %366 = vmatpush1.xpose.msra.mxu0 0.0
        %367 = vmatprep.subr.mxu0 0.0
        %368 = vmatpush1.xpose.msra.mxu0 0.0
        %369 = vmatprep.subr.mxu0 0.0
        %370 = vmatpush1.xpose.msra.mxu0 0.0
        %371 = vmatprep.subr.mxu0 0.0
        %372 = vmatpush1.xpose.msra.mxu0 0.0
        %373 = vmatprep.subr.mxu0 0.0
        %374 = vmatpush1.xpose.msra.mxu0 0.0
        %375 = vmatprep.subr.mxu0 0.0
        %376 = vmatpush1.xpose.msra.mxu0 0.0
        %377 = vmatprep.subr.mxu0 0.0
        %378 = vmatpush1.xpose.msra.mxu0 0.0
        %379 = vmatprep.subr.mxu0 0.0
        %380 = vmatpush1.xpose.msra.mxu0 0.0
        %381 = vmatprep.subr.mxu0 0.0
        %382 = vmatpush1.xpose.msra.mxu0 0.0
        %383 = vmatprep.subr.mxu0 0.0
        %384 = vmatpush1.xpose.msra.mxu0 0.0
        %385 = vmatprep.subr.mxu0 0.0
        %386 = vmatpush1.xpose.msra.mxu0 0.0
        %387 = vmatprep.subr.mxu0 0.0
        %388 = vmatpush1.xpose.msra.mxu0 0.0
        %389 = vmatprep.subr.mxu0 0.0
        %390 = vmatpush1.xpose.msra.mxu0 0.0
        %391 = vmatprep.subr.mxu0 0.0
        %392 = vmatpush1.xpose.msra.mxu0 0.0
        %393 = vmatprep.subr.mxu0 0.0
        %394 = vmatpush1.xpose.msra.mxu0 0.0
        %395 = vmatprep.subr.mxu0 0.0
        %396 = vmatpush1.xpose.msra.mxu0 0.0
        %397 = vmatprep.mubr.f32.mxu0 0.0
        %398 = vmatmul.mubr.f32.gmra.mrb[0].mxu0 %v328
        %v399 = vpop.f32.mrb[0].mxu0
        %v400 = vadd.f32 0.0, %v399
        %v401 = vpop.f32.mrb[0].mxu0
        %402 = vdwg.mxu0
        %v403 = vsel %vm325, %v400, -inf
        %v404 = vld [vmem:[#allocation2] sm:$0xff]
        %v405 = vsel %vm326, %v403, -inf
        %406 = vmax.xlane.f32.xlu0 %v405
        %v407 = vpop.xlane.xlu0 %406
        %v408 = vmax.f32 %v404, %v407
        %v409 = vsub.f32 %v404, %v408
        %v410 = vmul.f32 %v409, 1.442695
        %v411 = vpow.pop %v410
        %413 = vset.pattern.permute.xlu0 0
        %414 = vperm.xlu0 %413, %v408
        %v415 = vpop.permute.xlu0 %414
        %v417 = vsub.f32 %v403, %v415
        %v418 = vmul.f32 %v417, 1.442695
        %v419 = vpow.pop %v418
        %v420 = vld [vmem:[#allocation3] sm:$0xff]
        %v421 = vmul.f32 %v411, %v420
        %v422 = vsel %vm326, %v419, 0.0
        %423 = vadd.xlane.f32.xlu0 %v422
        %v424 = vpop.xlane.xlu0 %423
        %v425 = vadd.f32 %v421, %v424
        %vm426 = vcmask 7168
        %427 = vst.msk [vmem:[#allocation3] sm:$0xff] %vm426, %v425
        %v428 = vld [vmem:[#allocation4] sm:$0xff]
        %430 = vset.pattern.permute.xlu0 0
        %431 = vperm.xlu0 %430, %v411
        %v432 = vpop.permute.xlu0 %431
        %v434 = vmul.f32 %v432, %v428
        %v436 = vsel %vm326, %v419, 0
        %438 = vmatprep.subr.mxu0 0.0
        %439 = vmatpush1.msra.mxu0 %v316
        %440 = vmatprep.subr.mxu0 0.0
        %441 = vmatpush1.msra.mxu0 0.0
        %442 = vmatprep.subr.mxu0 0.0
        %443 = vmatpush1.msra.mxu0 0.0
        %444 = vmatprep.subr.mxu0 0.0
        %445 = vmatpush1.msra.mxu0 0.0
        %446 = vmatprep.subr.mxu0 0.0
        %447 = vmatpush1.msra.mxu0 0.0
        %448 = vmatprep.subr.mxu0 0.0
        %449 = vmatpush1.msra.mxu0 0.0
        %450 = vmatprep.subr.mxu0 0.0
        %451 = vmatpush1.msra.mxu0 0.0
        %452 = vmatprep.subr.mxu0 0.0
        %453 = vmatpush1.msra.mxu0 0.0
        %454 = vmatprep.subr.mxu0 0.0
        %455 = vmatpush1.msra.mxu0 0.0
        %456 = vmatprep.subr.mxu0 0.0
        %457 = vmatpush1.msra.mxu0 0.0
        %458 = vmatprep.subr.mxu0 0.0
        %459 = vmatpush1.msra.mxu0 0.0
        %460 = vmatprep.subr.mxu0 0.0
        %461 = vmatpush1.msra.mxu0 0.0
        %462 = vmatprep.subr.mxu0 0.0
        %463 = vmatpush1.msra.mxu0 0.0
        %464 = vmatprep.subr.mxu0 0.0
        %465 = vmatpush1.msra.mxu0 0.0
        %466 = vmatprep.subr.mxu0 0.0
        %467 = vmatpush1.msra.mxu0 0.0
        %468 = vmatprep.subr.mxu0 0.0
        %469 = vmatpush1.msra.mxu0 0.0
        %470 = vmatprep.subr.mxu0 0.0
        %471 = vmatpush1.msra.mxu0 0.0
        %472 = vmatprep.subr.mxu0 0.0
        %473 = vmatpush1.msra.mxu0 0.0
        %474 = vmatprep.subr.mxu0 0.0
        %475 = vmatpush1.msra.mxu0 0.0
        %476 = vmatprep.subr.mxu0 0.0
        %477 = vmatpush1.msra.mxu0 0.0
        %478 = vmatprep.subr.mxu0 0.0
        %479 = vmatpush1.msra.mxu0 0.0
        %480 = vmatprep.subr.mxu0 0.0
        %481 = vmatpush1.msra.mxu0 0.0
        %482 = vmatprep.subr.mxu0 0.0
        %483 = vmatpush1.msra.mxu0 0.0
        %484 = vmatprep.subr.mxu0 0.0
        %485 = vmatpush1.msra.mxu0 0.0
        %486 = vmatprep.subr.mxu0 0.0
        %487 = vmatpush1.msra.mxu0 0.0
        %488 = vmatprep.subr.mxu0 0.0
        %489 = vmatpush1.msra.mxu0 0.0
        %490 = vmatprep.subr.mxu0 0.0
        %491 = vmatpush1.msra.mxu0 0.0
        %492 = vmatprep.subr.mxu0 0.0
        %493 = vmatpush1.msra.mxu0 0.0
        %494 = vmatprep.subr.mxu0 0.0
        %495 = vmatpush1.msra.mxu0 0.0
        %496 = vmatprep.subr.mxu0 0.0
        %497 = vmatpush1.msra.mxu0 0.0
        %498 = vmatprep.subr.mxu0 0.0
        %499 = vmatpush1.msra.mxu0 0.0
        %500 = vmatprep.subr.mxu0 0.0
        %501 = vmatpush1.msra.mxu0 0.0
        %502 = vmatprep.mubr.f32.mxu0 0.0
        %503 = vmatmul.mubr.f32.gmra.mrb[0].mxu0 %v436
        %v504 = vpop.f32.mrb[0].mxu0
        %v505 = vadd.f32 0.0, %v504
        %v506 = vpop.f32.mrb[0].mxu0
        %507 = vdwg.mxu0
        %v508 = vadd.f32 %v434, %v505
        %509 = vst.msk [vmem:[#allocation4] sm:$0xff] %vm326, %v508
        %510 = vst.msk [vmem:[#allocation2] sm:$0xff] %vm426, %v408
        %511 = vrot.lane.b32.xlu0 %v314, 120
        %v512 = vpop.permute.xlu0 %511
        %513 = vrot.lane.b32.xlu0 %v315, 120
        %v514 = vpop.permute.xlu0 %513
        %v515 = vsel %vm326, %v512, 0
        %v517 = vsel %vm326, %v514, 0
        %519 = vmatprep.subr.mxu0 0.0
        %520 = vmatpush1.xpose.msra.mxu0 %v517
        %521 = vmatprep.subr.mxu0 0.0
        %522 = vmatpush1.xpose.msra.mxu0 0.0
        %523 = vmatprep.subr.mxu0 0.0
        %524 = vmatpush1.xpose.msra.mxu0 0.0
        %525 = vmatprep.subr.mxu0 0.0
        %526 = vmatpush1.xpose.msra.mxu0 0.0
        %527 = vmatprep.subr.mxu0 0.0
        %528 = vmatpush1.xpose.msra.mxu0 0.0
        %529 = vmatprep.subr.mxu0 0.0
        %530 = vmatpush1.xpose.msra.mxu0 0.0
        %531 = vmatprep.subr.mxu0 0.0
        %532 = vmatpush1.xpose.msra.mxu0 0.0
        %533 = vmatprep.subr.mxu0 0.0
        %534 = vmatpush1.xpose.msra.mxu0 0.0
        %535 = vmatprep.subr.mxu0 0.0
        %536 = vmatpush1.xpose.msra.mxu0 0.0
        %537 = vmatprep.subr.mxu0 0.0
        %538 = vmatpush1.xpose.msra.mxu0 0.0
        %539 = vmatprep.subr.mxu0 0.0
        %540 = vmatpush1.xpose.msra.mxu0 0.0
        %541 = vmatprep.subr.mxu0 0.0
        %542 = vmatpush1.xpose.msra.mxu0 0.0
        %543 = vmatprep.subr.mxu0 0.0
        %544 = vmatpush1.xpose.msra.mxu0 0.0
        %545 = vmatprep.subr.mxu0 0.0
        %546 = vmatpush1.xpose.msra.mxu0 0.0
        %547 = vmatprep.subr.mxu0 0.0
        %548 = vmatpush1.xpose.msra.mxu0 0.0
        %549 = vmatprep.subr.mxu0 0.0
        %550 = vmatpush1.xpose.msra.mxu0 0.0
        %551 = vmatprep.subr.mxu0 0.0
        %552 = vmatpush1.xpose.msra.mxu0 0.0
        %553 = vmatprep.subr.mxu0 0.0
        %554 = vmatpush1.xpose.msra.mxu0 0.0
        %555 = vmatprep.subr.mxu0 0.0
        %556 = vmatpush1.xpose.msra.mxu0 0.0
        %557 = vmatprep.subr.mxu0 0.0
        %558 = vmatpush1.xpose.msra.mxu0 0.0
        %559 = vmatprep.subr.mxu0 0.0
        %560 = vmatpush1.xpose.msra.mxu0 0.0
        %561 = vmatprep.subr.mxu0 0.0
        %562 = vmatpush1.xpose.msra.mxu0 0.0
        %563 = vmatprep.subr.mxu0 0.0
        %564 = vmatpush1.xpose.msra.mxu0 0.0
        %565 = vmatprep.subr.mxu0 0.0
        %566 = vmatpush1.xpose.msra.mxu0 0.0
        %567 = vmatprep.subr.mxu0 0.0
        %568 = vmatpush1.xpose.msra.mxu0 0.0
        %569 = vmatprep.subr.mxu0 0.0
        %570 = vmatpush1.xpose.msra.mxu0 0.0
        %571 = vmatprep.subr.mxu0 0.0
        %572 = vmatpush1.xpose.msra.mxu0 0.0
        %573 = vmatprep.subr.mxu0 0.0
        %574 = vmatpush1.xpose.msra.mxu0 0.0
        %575 = vmatprep.subr.mxu0 0.0
        %576 = vmatpush1.xpose.msra.mxu0 0.0
        %577 = vmatprep.subr.mxu0 0.0
        %578 = vmatpush1.xpose.msra.mxu0 0.0
        %579 = vmatprep.subr.mxu0 0.0
        %580 = vmatpush1.xpose.msra.mxu0 0.0
        %581 = vmatprep.subr.mxu0 0.0
        %582 = vmatpush1.xpose.msra.mxu0 0.0
        %583 = vmatprep.mubr.f32.mxu0 0.0
        %584 = vmatmul.mubr.f32.gmra.mrb[0].mxu0 %v515
        %v585 = vpop.f32.mrb[0].mxu0
        %v586 = vadd.f32 0.0, %v585
        %v587 = vpop.f32.mrb[0].mxu0
        %588 = vdwg.mxu0
        %v589 = vsel %vm325, %v586, -inf
        %s590 = scalar_lea.vmem [#allocation2], 8
        %v591 = vld [vmem:[%s590] sm:$0xff]
        %v592 = vsel %vm326, %v589, -inf
        %593 = vmax.xlane.f32.xlu0 %v592
        %v594 = vpop.xlane.xlu0 %593
        %v595 = vmax.f32 %v591, %v594
        %v596 = vsub.f32 %v591, %v595
        %v597 = vmul.f32 %v596, 1.442695
        %v598 = vpow.pop %v597
        %600 = vset.pattern.permute.xlu0 0
        %601 = vperm.xlu0 %600, %v595
        %v602 = vpop.permute.xlu0 %601
        %v604 = vsub.f32 %v589, %v602
        %v605 = vmul.f32 %v604, 1.442695
        %v606 = vpow.pop %v605
        %s607 = scalar_lea.vmem [#allocation3], 8
        %v608 = vld [vmem:[%s607] sm:$0xff]
        %v609 = vmul.f32 %v598, %v608
        %v610 = vsel %vm326, %v606, 0.0
        %611 = vadd.xlane.f32.xlu0 %v610
        %v612 = vpop.xlane.xlu0 %611
        %v613 = vadd.f32 %v609, %v612
        %614 = vst.msk [vmem:[%s607] sm:$0xff] %vm426, %v613
        %s615 = scalar_lea.vmem [#allocation4], 8
        %v616 = vld [vmem:[%s615] sm:$0xff]
        %618 = vset.pattern.permute.xlu0 0
        %619 = vperm.xlu0 %618, %v598
        %v620 = vpop.permute.xlu0 %619
        %v622 = vmul.f32 %v620, %v616
        %624 = vrot.lane.b32.xlu0 %v316, 120
        %v625 = vpop.permute.xlu0 %624
        %v628 = vsel %vm326, %v606, 0
        %630 = vmatprep.subr.mxu0 0.0
        %631 = vmatpush1.msra.mxu0 %v625
        %632 = vmatprep.subr.mxu0 0.0
        %633 = vmatpush1.msra.mxu0 0.0
        %634 = vmatprep.subr.mxu0 0.0
        %635 = vmatpush1.msra.mxu0 0.0
        %636 = vmatprep.subr.mxu0 0.0
        %637 = vmatpush1.msra.mxu0 0.0
        %638 = vmatprep.subr.mxu0 0.0
        %639 = vmatpush1.msra.mxu0 0.0
        %640 = vmatprep.subr.mxu0 0.0
        %641 = vmatpush1.msra.mxu0 0.0
        %642 = vmatprep.subr.mxu0 0.0
        %643 = vmatpush1.msra.mxu0 0.0
        %644 = vmatprep.subr.mxu0 0.0
        %645 = vmatpush1.msra.mxu0 0.0
        %646 = vmatprep.subr.mxu0 0.0
        %647 = vmatpush1.msra.mxu0 0.0
        %648 = vmatprep.subr.mxu0 0.0
        %649 = vmatpush1.msra.mxu0 0.0
        %650 = vmatprep.subr.mxu0 0.0
        %651 = vmatpush1.msra.mxu0 0.0
        %652 = vmatprep.subr.mxu0 0.0
        %653 = vmatpush1.msra.mxu0 0.0
        %654 = vmatprep.subr.mxu0 0.0
        %655 = vmatpush1.msra.mxu0 0.0
        %656 = vmatprep.subr.mxu0 0.0
        %657 = vmatpush1.msra.mxu0 0.0
        %658 = vmatprep.subr.mxu0 0.0
        %659 = vmatpush1.msra.mxu0 0.0
        %660 = vmatprep.subr.mxu0 0.0
        %661 = vmatpush1.msra.mxu0 0.0
        %662 = vmatprep.subr.mxu0 0.0
        %663 = vmatpush1.msra.mxu0 0.0
        %664 = vmatprep.subr.mxu0 0.0
        %665 = vmatpush1.msra.mxu0 0.0
        %666 = vmatprep.subr.mxu0 0.0
        %667 = vmatpush1.msra.mxu0 0.0
        %668 = vmatprep.subr.mxu0 0.0
        %669 = vmatpush1.msra.mxu0 0.0
        %670 = vmatprep.subr.mxu0 0.0
        %671 = vmatpush1.msra.mxu0 0.0
        %672 = vmatprep.subr.mxu0 0.0
        %673 = vmatpush1.msra.mxu0 0.0
        %674 = vmatprep.subr.mxu0 0.0
        %675 = vmatpush1.msra.mxu0 0.0
        %676 = vmatprep.subr.mxu0 0.0
        %677 = vmatpush1.msra.mxu0 0.0
        %678 = vmatprep.subr.mxu0 0.0
        %679 = vmatpush1.msra.mxu0 0.0
        %680 = vmatprep.subr.mxu0 0.0
        %681 = vmatpush1.msra.mxu0 0.0
        %682 = vmatprep.subr.mxu0 0.0
        %683 = vmatpush1.msra.mxu0 0.0
        %684 = vmatprep.subr.mxu0 0.0
        %685 = vmatpush1.msra.mxu0 0.0
        %686 = vmatprep.subr.mxu0 0.0
        %687 = vmatpush1.msra.mxu0 0.0
        %688 = vmatprep.subr.mxu0 0.0
        %689 = vmatpush1.msra.mxu0 0.0
        %690 = vmatprep.subr.mxu0 0.0
        %691 = vmatpush1.msra.mxu0 0.0
        %692 = vmatprep.subr.mxu0 0.0
        %693 = vmatpush1.msra.mxu0 0.0
        %694 = vmatprep.mubr.f32.mxu0 0.0
        %695 = vmatmul.mubr.f32.gmra.mrb[0].mxu0 %v628
        %v696 = vpop.f32.mrb[0].mxu0
        %v697 = vadd.f32 0.0, %v696
        %v698 = vpop.f32.mrb[0].mxu0
        %699 = vdwg.mxu0
        %v700 = vadd.f32 %v622, %v697
        %701 = vst.msk [vmem:[%s615] sm:$0xff] %vm326, %v700
        %702 = vst.msk [vmem:[%s590] sm:$0xff] %vm426, %v595
        %703 = vrot.lane.b32.xlu0 %v314, 112
        %v704 = vpop.permute.xlu0 %703
        %705 = vrot.lane.b32.xlu0 %v315, 112
        %v706 = vpop.permute.xlu0 %705
        %v707 = vsel %vm326, %v704, 0
        %v709 = vsel %vm326, %v706, 0
        %711 = vmatprep.subr.mxu0 0.0
        %712 = vmatpush1.xpose.msra.mxu0 %v709
        %713 = vmatprep.subr.mxu0 0.0
        %714 = vmatpush1.xpose.msra.mxu0 0.0
        %715 = vmatprep.subr.mxu0 0.0
        %716 = vmatpush1.xpose.msra.mxu0 0.0
        %717 = vmatprep.subr.mxu0 0.0
        %718 = vmatpush1.xpose.msra.mxu0 0.0
        %719 = vmatprep.subr.mxu0 0.0
        %720 = vmatpush1.xpose.msra.mxu0 0.0
        %721 = vmatprep.subr.mxu0 0.0
        %722 = vmatpush1.xpose.msra.mxu0 0.0
        %723 = vmatprep.subr.mxu0 0.0
        %724 = vmatpush1.xpose.msra.mxu0 0.0
        %725 = vmatprep.subr.mxu0 0.0
        %726 = vmatpush1.xpose.msra.mxu0 0.0
        %727 = vmatprep.subr.mxu0 0.0
        %728 = vmatpush1.xpose.msra.mxu0 0.0
        %729 = vmatprep.subr.mxu0 0.0
        %730 = vmatpush1.xpose.msra.mxu0 0.0
        %731 = vmatprep.subr.mxu0 0.0
        %732 = vmatpush1.xpose.msra.mxu0 0.0
        %733 = vmatprep.subr.mxu0 0.0
        %734 = vmatpush1.xpose.msra.mxu0 0.0
        %735 = vmatprep.subr.mxu0 0.0
        %736 = vmatpush1.xpose.msra.mxu0 0.0
        %737 = vmatprep.subr.mxu0 0.0
        %738 = vmatpush1.xpose.msra.mxu0 0.0
        %739 = vmatprep.subr.mxu0 0.0
        %740 = vmatpush1.xpose.msra.mxu0 0.0
        %741 = vmatprep.subr.mxu0 0.0
        %742 = vmatpush1.xpose.msra.mxu0 0.0
        %743 = vmatprep.subr.mxu0 0.0
        %744 = vmatpush1.xpose.msra.mxu0 0.0
        %745 = vmatprep.subr.mxu0 0.0
        %746 = vmatpush1.xpose.msra.mxu0 0.0
        %747 = vmatprep.subr.mxu0 0.0
        %748 = vmatpush1.xpose.msra.mxu0 0.0
        %749 = vmatprep.subr.mxu0 0.0
        %750 = vmatpush1.xpose.msra.mxu0 0.0
        %751 = vmatprep.subr.mxu0 0.0
        %752 = vmatpush1.xpose.msra.mxu0 0.0
        %753 = vmatprep.subr.mxu0 0.0
        %754 = vmatpush1.xpose.msra.mxu0 0.0
        %755 = vmatprep.subr.mxu0 0.0
        %756 = vmatpush1.xpose.msra.mxu0 0.0
        %757 = vmatprep.subr.mxu0 0.0
        %758 = vmatpush1.xpose.msra.mxu0 0.0
        %759 = vmatprep.subr.mxu0 0.0
        %760 = vmatpush1.xpose.msra.mxu0 0.0
        %761 = vmatprep.subr.mxu0 0.0
        %762 = vmatpush1.xpose.msra.mxu0 0.0
        %763 = vmatprep.subr.mxu0 0.0
        %764 = vmatpush1.xpose.msra.mxu0 0.0
        %765 = vmatprep.subr.mxu0 0.0
        %766 = vmatpush1.xpose.msra.mxu0 0.0
        %767 = vmatprep.subr.mxu0 0.0
        %768 = vmatpush1.xpose.msra.mxu0 0.0
        %769 = vmatprep.subr.mxu0 0.0
        %770 = vmatpush1.xpose.msra.mxu0 0.0
        %771 = vmatprep.subr.mxu0 0.0
        %772 = vmatpush1.xpose.msra.mxu0 0.0
        %773 = vmatprep.subr.mxu0 0.0
        %774 = vmatpush1.xpose.msra.mxu0 0.0
        %775 = vmatprep.mubr.f32.mxu0 0.0
        %776 = vmatmul.mubr.f32.gmra.mrb[0].mxu0 %v707
        %v777 = vpop.f32.mrb[0].mxu0
        %v778 = vadd.f32 0.0, %v777
        %v779 = vpop.f32.mrb[0].mxu0
        %780 = vdwg.mxu0
        %v781 = vsel %vm325, %v778, -inf
        %s782 = scalar_lea.vmem [#allocation2], 16
        %v783 = vld [vmem:[%s782] sm:$0xff]
        %v784 = vsel %vm326, %v781, -inf
        %785 = vmax.xlane.f32.xlu0 %v784
        %v786 = vpop.xlane.xlu0 %785
        %v787 = vmax.f32 %v783, %v786
        %v788 = vsub.f32 %v783, %v787
        %v789 = vmul.f32 %v788, 1.442695
        %v790 = vpow.pop %v789
        %792 = vset.pattern.permute.xlu0 0
        %793 = vperm.xlu0 %792, %v787
        %v794 = vpop.permute.xlu0 %793
        %v796 = vsub.f32 %v781, %v794
        %v797 = vmul.f32 %v796, 1.442695
        %v798 = vpow.pop %v797
        %s799 = scalar_lea.vmem [#allocation3], 16
        %v800 = vld [vmem:[%s799] sm:$0xff]
        %v801 = vmul.f32 %v790, %v800
        %v802 = vsel %vm326, %v798, 0.0
        %803 = vadd.xlane.f32.xlu0 %v802
        %v804 = vpop.xlane.xlu0 %803
        %v805 = vadd.f32 %v801, %v804
        %806 = vst.msk [vmem:[%s799] sm:$0xff] %vm426, %v805
        %s807 = scalar_lea.vmem [#allocation4], 16
        %v808 = vld [vmem:[%s807] sm:$0xff]
        %810 = vset.pattern.permute.xlu0 0
        %811 = vperm.xlu0 %810, %v790
        %v812 = vpop.permute.xlu0 %811
        %v814 = vmul.f32 %v812, %v808
        %815 = vrot.lane.b32.xlu0 %v316, 112
        %v816 = vpop.permute.xlu0 %815
        %v819 = vsel %vm326, %v798, 0
        %821 = vmatprep.subr.mxu0 0.0
        %822 = vmatpush1.msra.mxu0 %v816
        %823 = vmatprep.subr.mxu0 0.0
        %824 = vmatpush1.msra.mxu0 0.0
        %825 = vmatprep.subr.mxu0 0.0
        %826 = vmatpush1.msra.mxu0 0.0
        %827 = vmatprep.subr.mxu0 0.0
        %828 = vmatpush1.msra.mxu0 0.0
        %829 = vmatprep.subr.mxu0 0.0
        %830 = vmatpush1.msra.mxu0 0.0
        %831 = vmatprep.subr.mxu0 0.0
        %832 = vmatpush1.msra.mxu0 0.0
        %833 = vmatprep.subr.mxu0 0.0
        %834 = vmatpush1.msra.mxu0 0.0
        %835 = vmatprep.subr.mxu0 0.0
        %836 = vmatpush1.msra.mxu0 0.0
        %837 = vmatprep.subr.mxu0 0.0
        %838 = vmatpush1.msra.mxu0 0.0
        %839 = vmatprep.subr.mxu0 0.0
        %840 = vmatpush1.msra.mxu0 0.0
        %841 = vmatprep.subr.mxu0 0.0
        %842 = vmatpush1.msra.mxu0 0.0
        %843 = vmatprep.subr.mxu0 0.0
        %844 = vmatpush1.msra.mxu0 0.0
        %845 = vmatprep.subr.mxu0 0.0
        %846 = vmatpush1.msra.mxu0 0.0
        %847 = vmatprep.subr.mxu0 0.0
        %848 = vmatpush1.msra.mxu0 0.0
        %849 = vmatprep.subr.mxu0 0.0
        %850 = vmatpush1.msra.mxu0 0.0
        %851 = vmatprep.subr.mxu0 0.0
        %852 = vmatpush1.msra.mxu0 0.0
        %853 = vmatprep.subr.mxu0 0.0
        %854 = vmatpush1.msra.mxu0 0.0
        %855 = vmatprep.subr.mxu0 0.0
        %856 = vmatpush1.msra.mxu0 0.0
        %857 = vmatprep.subr.mxu0 0.0
        %858 = vmatpush1.msra.mxu0 0.0
        %859 = vmatprep.subr.mxu0 0.0
        %860 = vmatpush1.msra.mxu0 0.0
        %861 = vmatprep.subr.mxu0 0.0
        %862 = vmatpush1.msra.mxu0 0.0
        %863 = vmatprep.subr.mxu0 0.0
        %864 = vmatpush1.msra.mxu0 0.0
        %865 = vmatprep.subr.mxu0 0.0
        %866 = vmatpush1.msra.mxu0 0.0
        %867 = vmatprep.subr.mxu0 0.0
        %868 = vmatpush1.msra.mxu0 0.0
        %869 = vmatprep.subr.mxu0 0.0
        %870 = vmatpush1.msra.mxu0 0.0
        %871 = vmatprep.subr.mxu0 0.0
        %872 = vmatpush1.msra.mxu0 0.0
        %873 = vmatprep.subr.mxu0 0.0
        %874 = vmatpush1.msra.mxu0 0.0
        %875 = vmatprep.subr.mxu0 0.0
        %876 = vmatpush1.msra.mxu0 0.0
        %877 = vmatprep.subr.mxu0 0.0
        %878 = vmatpush1.msra.mxu0 0.0
        %879 = vmatprep.subr.mxu0 0.0
        %880 = vmatpush1.msra.mxu0 0.0
        %881 = vmatprep.subr.mxu0 0.0
        %882 = vmatpush1.msra.mxu0 0.0
        %883 = vmatprep.subr.mxu0 0.0
        %884 = vmatpush1.msra.mxu0 0.0
        %885 = vmatprep.mubr.f32.mxu0 0.0
        %886 = vmatmul.mubr.f32.gmra.mrb[0].mxu0 %v819
        %v887 = vpop.f32.mrb[0].mxu0
        %v888 = vadd.f32 0.0, %v887
        %v889 = vpop.f32.mrb[0].mxu0
        %890 = vdwg.mxu0
        %v891 = vadd.f32 %v814, %v888
        %892 = vst.msk [vmem:[%s807] sm:$0xff] %vm326, %v891
        %893 = vst.msk [vmem:[%s782] sm:$0xff] %vm426, %v787
        %894 = vrot.lane.b32.xlu0 %v314, 104
        %v895 = vpop.permute.xlu0 %894
        %896 = vrot.lane.b32.xlu0 %v315, 104
        %v897 = vpop.permute.xlu0 %896
        %v898 = vsel %vm326, %v895, 0
        %v900 = vsel %vm326, %v897, 0
        %902 = vmatprep.subr.mxu0 0.0
        %903 = vmatpush1.xpose.msra.mxu0 %v900
        %904 = vmatprep.subr.mxu0 0.0
        %905 = vmatpush1.xpose.msra.mxu0 0.0
        %906 = vmatprep.subr.mxu0 0.0
        %907 = vmatpush1.xpose.msra.mxu0 0.0
        %908 = vmatprep.subr.mxu0 0.0
        %909 = vmatpush1.xpose.msra.mxu0 0.0
        %910 = vmatprep.subr.mxu0 0.0
        %911 = vmatpush1.xpose.msra.mxu0 0.0
        %912 = vmatprep.subr.mxu0 0.0
        %913 = vmatpush1.xpose.msra.mxu0 0.0
        %914 = vmatprep.subr.mxu0 0.0
        %915 = vmatpush1.xpose.msra.mxu0 0.0
        %916 = vmatprep.subr.mxu0 0.0
        %917 = vmatpush1.xpose.msra.mxu0 0.0
        %918 = vmatprep.subr.mxu0 0.0
        %919 = vmatpush1.xpose.msra.mxu0 0.0
        %920 = vmatprep.subr.mxu0 0.0
        %921 = vmatpush1.xpose.msra.mxu0 0.0
        %922 = vmatprep.subr.mxu0 0.0
        %923 = vmatpush1.xpose.msra.mxu0 0.0
        %924 = vmatprep.subr.mxu0 0.0
        %925 = vmatpush1.xpose.msra.mxu0 0.0
        %926 = vmatprep.subr.mxu0 0.0
        %927 = vmatpush1.xpose.msra.mxu0 0.0
        %928 = vmatprep.subr.mxu0 0.0
        %929 = vmatpush1.xpose.msra.mxu0 0.0
        %930 = vmatprep.subr.mxu0 0.0
        %931 = vmatpush1.xpose.msra.mxu0 0.0
        %932 = vmatprep.subr.mxu0 0.0
        %933 = vmatpush1.xpose.msra.mxu0 0.0
        %934 = vmatprep.subr.mxu0 0.0
        %935 = vmatpush1.xpose.msra.mxu0 0.0
        %936 = vmatprep.subr.mxu0 0.0
        %937 = vmatpush1.xpose.msra.mxu0 0.0
        %938 = vmatprep.subr.mxu0 0.0
        %939 = vmatpush1.xpose.msra.mxu0 0.0
        %940 = vmatprep.subr.mxu0 0.0
        %941 = vmatpush1.xpose.msra.mxu0 0.0
        %942 = vmatprep.subr.mxu0 0.0
        %943 = vmatpush1.xpose.msra.mxu0 0.0
        %944 = vmatprep.subr.mxu0 0.0
        %945 = vmatpush1.xpose.msra.mxu0 0.0
        %946 = vmatprep.subr.mxu0 0.0
        %947 = vmatpush1.xpose.msra.mxu0 0.0
        %948 = vmatprep.subr.mxu0 0.0
        %949 = vmatpush1.xpose.msra.mxu0 0.0
        %950 = vmatprep.subr.mxu0 0.0
        %951 = vmatpush1.xpose.msra.mxu0 0.0
        %952 = vmatprep.subr.mxu0 0.0
        %953 = vmatpush1.xpose.msra.mxu0 0.0
        %954 = vmatprep.subr.mxu0 0.0
        %955 = vmatpush1.xpose.msra.mxu0 0.0
        %956 = vmatprep.subr.mxu0 0.0
        %957 = vmatpush1.xpose.msra.mxu0 0.0
        %958 = vmatprep.subr.mxu0 0.0
        %959 = vmatpush1.xpose.msra.mxu0 0.0
        %960 = vmatprep.subr.mxu0 0.0
        %961 = vmatpush1.xpose.msra.mxu0 0.0
        %962 = vmatprep.subr.mxu0 0.0
        %963 = vmatpush1.xpose.msra.mxu0 0.0
        %964 = vmatprep.subr.mxu0 0.0
        %965 = vmatpush1.xpose.msra.mxu0 0.0
        %966 = vmatprep.mubr.f32.mxu0 0.0
        %967 = vmatmul.mubr.f32.gmra.mrb[0].mxu0 %v898
        %v968 = vpop.f32.mrb[0].mxu0
        %v969 = vadd.f32 0.0, %v968
        %v970 = vpop.f32.mrb[0].mxu0
        %971 = vdwg.mxu0
        %v972 = vsel %vm325, %v969, -inf
        %s973 = scalar_lea.vmem [#allocation2], 24
        %v974 = vld [vmem:[%s973] sm:$0xff]
        %v975 = vsel %vm326, %v972, -inf
        %976 = vmax.xlane.f32.xlu0 %v975
        %v977 = vpop.xlane.xlu0 %976
        %v978 = vmax.f32 %v974, %v977
        %v979 = vsub.f32 %v974, %v978
        %v980 = vmul.f32 %v979, 1.442695
        %v981 = vpow.pop %v980
        %983 = vset.pattern.permute.xlu0 0
        %984 = vperm.xlu0 %983, %v978
        %v985 = vpop.permute.xlu0 %984
        %v987 = vsub.f32 %v972, %v985
        %v988 = vmul.f32 %v987, 1.442695
        %v989 = vpow.pop %v988
        %s990 = scalar_lea.vmem [#allocation3], 24
        %v991 = vld [vmem:[%s990] sm:$0xff]
        %v992 = vmul.f32 %v981, %v991
        %v993 = vsel %vm326, %v989, 0.0
        %994 = vadd.xlane.f32.xlu0 %v993
        %v995 = vpop.xlane.xlu0 %994
        %v996 = vadd.f32 %v992, %v995
        %997 = vst.msk [vmem:[%s990] sm:$0xff] %vm426, %v996
        %s998 = scalar_lea.vmem [#allocation4], 24
        %v999 = vld [vmem:[%s998] sm:$0xff]
        %1001 = vset.pattern.permute.xlu0 0
        %1002 = vperm.xlu0 %1001, %v981
        %v1003 = vpop.permute.xlu0 %1002
        %v1005 = vmul.f32 %v1003, %v999
        %1006 = vrot.lane.b32.xlu0 %v316, 104
        %v1007 = vpop.permute.xlu0 %1006
        %v1010 = vsel %vm326, %v989, 0
        %1012 = vmatprep.subr.mxu0 0.0
        %1013 = vmatpush1.msra.mxu0 %v1007
        %1014 = vmatprep.subr.mxu0 0.0
        %1015 = vmatpush1.msra.mxu0 0.0
        %1016 = vmatprep.subr.mxu0 0.0
        %1017 = vmatpush1.msra.mxu0 0.0
        %1018 = vmatprep.subr.mxu0 0.0
        %1019 = vmatpush1.msra.mxu0 0.0
        %1020 = vmatprep.subr.mxu0 0.0
        %1021 = vmatpush1.msra.mxu0 0.0
        %1022 = vmatprep.subr.mxu0 0.0
        %1023 = vmatpush1.msra.mxu0 0.0
        %1024 = vmatprep.subr.mxu0 0.0
        %1025 = vmatpush1.msra.mxu0 0.0
        %1026 = vmatprep.subr.mxu0 0.0
        %1027 = vmatpush1.msra.mxu0 0.0
        %1028 = vmatprep.subr.mxu0 0.0
        %1029 = vmatpush1.msra.mxu0 0.0
        %1030 = vmatprep.subr.mxu0 0.0
        %1031 = vmatpush1.msra.mxu0 0.0
        %1032 = vmatprep.subr.mxu0 0.0
        %1033 = vmatpush1.msra.mxu0 0.0
        %1034 = vmatprep.subr.mxu0 0.0
        %1035 = vmatpush1.msra.mxu0 0.0
        %1036 = vmatprep.subr.mxu0 0.0
        %1037 = vmatpush1.msra.mxu0 0.0
        %1038 = vmatprep.subr.mxu0 0.0
        %1039 = vmatpush1.msra.mxu0 0.0
        %1040 = vmatprep.subr.mxu0 0.0
        %1041 = vmatpush1.msra.mxu0 0.0
        %1042 = vmatprep.subr.mxu0 0.0
        %1043 = vmatpush1.msra.mxu0 0.0
        %1044 = vmatprep.subr.mxu0 0.0
        %1045 = vmatpush1.msra.mxu0 0.0
        %1046 = vmatprep.subr.mxu0 0.0
        %1047 = vmatpush1.msra.mxu0 0.0
        %1048 = vmatprep.subr.mxu0 0.0
        %1049 = vmatpush1.msra.mxu0 0.0
        %1050 = vmatprep.subr.mxu0 0.0
        %1051 = vmatpush1.msra.mxu0 0.0
        %1052 = vmatprep.subr.mxu0 0.0
        %1053 = vmatpush1.msra.mxu0 0.0
        %1054 = vmatprep.subr.mxu0 0.0
        %1055 = vmatpush1.msra.mxu0 0.0
        %1056 = vmatprep.subr.mxu0 0.0
        %1057 = vmatpush1.msra.mxu0 0.0
        %1058 = vmatprep.subr.mxu0 0.0
        %1059 = vmatpush1.msra.mxu0 0.0
        %1060 = vmatprep.subr.mxu0 0.0
        %1061 = vmatpush1.msra.mxu0 0.0
        %1062 = vmatprep.subr.mxu0 0.0
        %1063 = vmatpush1.msra.mxu0 0.0
        %1064 = vmatprep.subr.mxu0 0.0
        %1065 = vmatpush1.msra.mxu0 0.0
        %1066 = vmatprep.subr.mxu0 0.0
        %1067 = vmatpush1.msra.mxu0 0.0
        %1068 = vmatprep.subr.mxu0 0.0
        %1069 = vmatpush1.msra.mxu0 0.0
        %1070 = vmatprep.subr.mxu0 0.0
        %1071 = vmatpush1.msra.mxu0 0.0
        %1072 = vmatprep.subr.mxu0 0.0
        %1073 = vmatpush1.msra.mxu0 0.0
        %1074 = vmatprep.subr.mxu0 0.0
        %1075 = vmatpush1.msra.mxu0 0.0
        %1076 = vmatprep.mubr.f32.mxu0 0.0
        %1077 = vmatmul.mubr.f32.gmra.mrb[0].mxu0 %v1010
        %v1078 = vpop.f32.mrb[0].mxu0
        %v1079 = vadd.f32 0.0, %v1078
        %v1080 = vpop.f32.mrb[0].mxu0
        %1081 = vdwg.mxu0
        %v1082 = vadd.f32 %v1005, %v1079
        %1083 = vst.msk [vmem:[%s998] sm:$0xff] %vm326, %v1082
        %1084 = vst.msk [vmem:[%s973] sm:$0xff] %vm426, %v978
      $region40: #{causal_self_attention.8} parent=31 // pred_fallthru
        _
      // Predicated region
      $region41: #{causal_self_attention.8} parent=31 // pred_check
        %p1085 = pneg %p288
      $region42: #{causal_self_attention.8} parent=31 // pred_check_branch
        %1087 = sbr.rel (%p1085) target = $region44
      $region43: #{causal_self_attention.8} parent=31 // pred_region
        %v1088 = vld [vmem:[#allocation4] sm:$0xff]
        %v1089 = vld [vmem:[#allocation3] sm:$0xff]
        %v1090 = vrcp.pop %v1089
        %1092 = vset.pattern.permute.xlu0 0
        %1093 = vperm.xlu0 %1092, %v1090
        %v1094 = vpop.permute.xlu0 %1093
        %v1096 = vmul.f32 %v1088, %v1094
        %s1097 = scalar_lea.vmem [#allocation4], 8
        %v1098 = vld [vmem:[%s1097] sm:$0xff]
        %s1099 = scalar_lea.vmem [#allocation3], 8
        %v1100 = vld [vmem:[%s1099] sm:$0xff]
        %v1101 = vrcp.pop %v1100
        %1103 = vset.pattern.permute.xlu0 0
        %1104 = vperm.xlu0 %1103, %v1101
        %v1105 = vpop.permute.xlu0 %1104
        %v1107 = vmul.f32 %v1098, %v1105
        %s1108 = scalar_lea.vmem [#allocation4], 16
        %v1109 = vld [vmem:[%s1108] sm:$0xff]
        %s1110 = scalar_lea.vmem [#allocation3], 16
        %v1111 = vld [vmem:[%s1110] sm:$0xff]
        %v1112 = vrcp.pop %v1111
        %1114 = vset.pattern.permute.xlu0 0
        %1115 = vperm.xlu0 %1114, %v1112
        %v1116 = vpop.permute.xlu0 %1115
        %v1118 = vmul.f32 %v1109, %v1116
        %s1119 = scalar_lea.vmem [#allocation4], 24
        %v1120 = vld [vmem:[%s1119] sm:$0xff]
        %s1121 = scalar_lea.vmem [#allocation3], 24
        %v1122 = vld [vmem:[%s1121] sm:$0xff]
        %v1123 = vrcp.pop %v1122
        %1125 = vset.pattern.permute.xlu0 0
        %1126 = vperm.xlu0 %1125, %v1123
        %v1127 = vpop.permute.xlu0 %1126
        %v1129 = vmul.f32 %v1120, %v1127
        %1131 = vrot.lane.b32.xlu0 %v1107, 8
        %v1132 = vpop.permute.xlu0 %1131
        %1135 = vrot.lane.b32.xlu0 %v1118, 16
        %v1136 = vpop.permute.xlu0 %1135
        %1139 = vrot.lane.b32.xlu0 %v1129, 24
        %v1140 = vpop.permute.xlu0 %1139
        %vm1142 = vcmask 64512
        %v1143 = vsel %vm1142, %v1096, %v1132
        %vm1144 = vcmask 130048
        %v1145 = vsel %vm1144, %v1143, %v1136
        %vm1146 = vcmask 195584
        %v1147 = vsel %vm1146, %v1145, %v1140
        %vm1148 = vcmask 261120
        %1149 = vst.msk [vmem:[%s287] sm:$0xff] %vm1148, %v1147
      $region44: #{causal_self_attention.8} parent=31 // pred_fallthru
        _
      %p1150 = scmp.lt.s32.totalorder %s19, 1
      %s1151 = scalar_select %p1150, %s19, 1
      %p1152 = scmp.lt.s32.totalorder %s20, 0
      %s1153 = scalar_select %p1152, %s20, 0
      %s1154 = sadd.s32 %s1153, %s1151
      %s1155 = smul.addr %s1154, 8
      %s1156 = scalar_lea.vmem %s3, %s1155
      // Predicated region
      $region45: #{causal_self_attention.8} parent=31 // pred_check
        %p1157 = pneg %p145
      $region46: #{causal_self_attention.8} parent=31 // pred_check_branch
        %1159 = sbr.rel (%p1157) target = $region48
      $region47: #{causal_self_attention.8} parent=31 // pred_region
        _
      $region48: #{causal_self_attention.8} parent=31 // pred_fallthru
        _
    $region32: #{causal_self_attention.8} parent=5 // pred_fallthru
      _
    %p1160 = scmp.le.s32.totalorder 2, %s9
    // Predicated region
    $region49: #{causal_self_attention.8} parent=5 // pred_check
      %p1161 = pneg %p1160
    $region50: #{causal_self_attention.8} parent=5 // pred_check_branch
      %1163 = sbr.rel (%p1161) target = $region52
    $region51: #{causal_self_attention.8} parent=5 // pred_region
      %s1164 = ssub.s32 %s9, 2
      // Predicated region
      $region53: #{causal_self_attention.8} parent=51 // pred_check
        %p1165 = pneg %p151
      $region54: #{causal_self_attention.8} parent=51 // pred_check_branch
        %1167 = sbr.rel (%p1165) target = $region56
      $region55: #{causal_self_attention.8} parent=51 // pred_region
        %p1168 = scmp.lt.s32.totalorder %s22, 1
        %s1169 = scalar_select %p1168, %s22, 1
        %p1170 = scmp.lt.s32.totalorder %s23, 0
        %s1171 = scalar_select %p1170, %s23, 0
        %s1172 = sadd.s32 %s1171, %s1169
        %s1173 = smul.addr %s1172, 8
        %s1174 = scalar_lea.vmem %s3, %s1173
      $region56: #{causal_self_attention.8} parent=51 // pred_fallthru
        _
    $region52: #{causal_self_attention.8} parent=5 // pred_fallthru
      _
  $region6: #{causal_self_attention.8} parent=0 // loop_footer
    %s13 = sadd.s32 1, %s9
  $region7: #{causal_self_attention.8} parent=0 // loop_footer_branch
    %8 = sbr.rel target = $region3
  $region8: #{causal_self_attention.8} parent=0 // loop_exit
    _

</llo_original>
